<compile_context>
chip_gen: v7x
topology: tpu7x:2x2x1
jax: 0.10.0
libtpu: 0.0.40
codegen_flags: <defaults>
</compile_context>

<pallas_src>
import jax
import jax.numpy as jnp
from jax.experimental import pallas as pl
from jax.experimental.pallas import tpu as pltpu


def mlp_kernel(x_ref, w1_ref, b1_ref, w2_ref, b2_ref, w3_ref, b3_ref, o_ref):
    # Layer 1: fc1 + ReLU   (TB,784)bf16 @ (784,128)bf16 -> f32 acc
    h1 = jnp.dot(x_ref[...], w1_ref[...], preferred_element_type=jnp.float32)
    h1 = jnp.maximum(h1 + b1_ref[...], 0.0)
    # Layer 2: fc2 + ReLU   (TB,128) @ (128,128)
    h2 = jnp.dot(h1.astype(w2_ref.dtype), w2_ref[...],
                 preferred_element_type=jnp.float32)
    h2 = jnp.maximum(h2 + b2_ref[...], 0.0)
    # Layer 3: fc3 logits (lane-dense, padded to 128 cols)  (TB,128) @ (128,128)
    out = jnp.dot(h2.astype(w3_ref.dtype), w3_ref[...],
                  preferred_element_type=jnp.float32)
    o_ref[...] = (out + b3_ref[...]).astype(o_ref.dtype)


def mlp_forward(x, w1, b1, w2, b2, w3, b3, *, tb=256):
    """x: (B, C, H, W) float32. Returns logits (B, num_classes) float32.

    tb: batch tile. 256 is safe everywhere; on v5e/v6e (128 MiB VMEM) it can be
    raised to 1024-4096 for large-batch throughput (raise vmem_limit_bytes too).
    """
    B = x.shape[0]
    x2d = x.reshape(B, -1)                      # same semantics as torch x.view(B, -1)
    in_features = x2d.shape[1]
    hidden = w1.shape[1]
    nc = w3.shape[1]

    # --- lane-dense logits: pad num_classes up to a multiple of 128 ---------
    ncp = ((nc + 127) // 128) * 128
    w3p = jnp.zeros((hidden, ncp), w3.dtype).at[:, :nc].set(w3)
    b3p = jnp.zeros((1, ncp), b3.dtype).at[:, :nc].set(b3)

    # --- bf16 MXU path (f32 accumulation happens inside the kernel) ---------
    x_bf = x2d.astype(jnp.bfloat16)
    w1b = w1.astype(jnp.bfloat16)
    w2b = w2.astype(jnp.bfloat16)
    w3b = w3p.astype(jnp.bfloat16)
    b1f = b1.astype(jnp.float32)
    b2f = b2.astype(jnp.float32)
    b3f = b3p.astype(jnp.float32)

    # --- pad batch to a multiple of the tile -------------------------------
    b_pad = ((B + tb - 1) // tb) * tb
    if b_pad != B:
        x_bf = jnp.pad(x_bf, ((0, b_pad - B), (0, 0)))

    grid = (b_pad // tb,)
    const = lambda i: (0, 0)                    # weights/biases: VMEM-resident

    out = pl.pallas_call(
        mlp_kernel,
        out_shape=jax.ShapeDtypeStruct((b_pad, ncp), jnp.float32),
        grid_spec=pltpu.PrefetchScalarGridSpec(
            num_scalar_prefetch=0,
            grid=grid,
            in_specs=[
                pl.BlockSpec((tb, in_features), lambda i: (i, 0)),   # x tile
                pl.BlockSpec((in_features, hidden), const),          # w1
                pl.BlockSpec((1, hidden), const),                    # b1
                pl.BlockSpec((hidden, hidden), const),               # w2
                pl.BlockSpec((1, hidden), const),                    # b2
                pl.BlockSpec((hidden, ncp), const),                  # w3 (padded)
                pl.BlockSpec((1, ncp), const),                       # b3 (padded)
            ],
            out_specs=pl.BlockSpec((tb, ncp), lambda i: (i, 0)),
        ),
        compiler_params=pltpu.CompilerParams(
            dimension_semantics=("parallel",),      # 2x on v7x dual-TC; no-op on v5e/v6e
            vmem_limit_bytes=64 * 1024 * 1024,
        ),
    )(x_bf, w1b, b1f, w2b, b2f, w3b, b3f)

    return out[:B, :nc]


def init_params(key, input_size=784, hidden_size=128, num_classes=10):
    """Deterministic synthetic parameters (PyTorch-like uniform fan-in init)."""
    ks = jax.random.split(key, 6)

    def lin(kw, kb, fan_in, fan_out):
        bound = 1.0 / jnp.sqrt(fan_in)
        w = jax.random.uniform(kw, (fan_in, fan_out), jnp.float32, -bound, bound)
        b = jax.random.uniform(kb, (1, fan_out), jnp.float32, -bound, bound)
        return w, b

    w1, b1 = lin(ks[0], ks[1], input_size, hidden_size)
    w2, b2 = lin(ks[2], ks[3], hidden_size, hidden_size)
    w3, b3 = lin(ks[4], ks[5], hidden_size, num_classes)
    return w1, b1, w2, b2, w3, b3


if __name__ == "__main__":
    key = jax.random.PRNGKey(0)
    k_x, k_p = jax.random.split(key)

    B, C, H, W = 8, 1, 28, 28  # MNIST-shaped input implied by input_size=784
    x = jax.random.normal(k_x, (B, C, H, W), jnp.float32)
    params = init_params(k_p)

    out = mlp_forward(x, *params)
    out = jax.block_until_ready(out)

    # Reference in plain JAX with the same bf16-weights / f32-accumulation math.
    w1, b1, w2, b2, w3, b3 = params
    x2d = x.reshape(B, -1).astype(jnp.bfloat16)
    h1 = jnp.maximum(
        jnp.dot(x2d, w1.astype(jnp.bfloat16), preferred_element_type=jnp.float32) + b1, 0.0)
    h2 = jnp.maximum(
        jnp.dot(h1.astype(jnp.bfloat16), w2.astype(jnp.bfloat16),
                preferred_element_type=jnp.float32) + b2, 0.0)
    ref = jnp.dot(h2.astype(jnp.bfloat16), w3.astype(jnp.bfloat16),
                  preferred_element_type=jnp.float32) + b3

    assert out.shape == (B, 10)
    assert jnp.allclose(out, ref, atol=2e-3, rtol=2e-3), float(jnp.max(jnp.abs(out - ref)))

    print("KERNEL_OK")
</pallas_src>

<mosaic_0001>
module attributes {stable_mosaic.version = 11 : i64} {
  func.func @mlp_kernel(%arg0: i32, %arg1: memref<256x784xbf16, #tpu.memory_space<vmem>>, %arg2: memref<784x128xbf16, #tpu.memory_space<vmem>>, %arg3: memref<1x128xf32, #tpu.memory_space<vmem>>, %arg4: memref<128x128xbf16, #tpu.memory_space<vmem>>, %arg5: memref<1x128xf32, #tpu.memory_space<vmem>>, %arg6: memref<128x128xbf16, #tpu.memory_space<vmem>>, %arg7: memref<1x128xf32, #tpu.memory_space<vmem>>, %arg8: memref<256x128xf32, #tpu.memory_space<vmem>>) attributes {dimension_semantics = [#tpu.dimension_semantics<parallel>], iteration_bounds = array<i64: 1>, scalar_prefetch = 0 : i64, scratch_operands = 0 : i64, tpu.core_type = #tpu.core_type<tc>, window_params = [{transform_indices = @transform_0, window_bounds = array<i64: 256, 784>}, {pipeline_mode = #tpu.pipeline_mode<synchronous>, transform_indices = @transform_1, window_bounds = array<i64: 784, 128>}, {pipeline_mode = #tpu.pipeline_mode<synchronous>, transform_indices = @transform_2, window_bounds = array<i64: 1, 128>}, {pipeline_mode = #tpu.pipeline_mode<synchronous>, transform_indices = @transform_3, window_bounds = array<i64: 128, 128>}, {pipeline_mode = #tpu.pipeline_mode<synchronous>, transform_indices = @transform_4, window_bounds = array<i64: 1, 128>}, {pipeline_mode = #tpu.pipeline_mode<synchronous>, transform_indices = @transform_5, window_bounds = array<i64: 128, 128>}, {pipeline_mode = #tpu.pipeline_mode<synchronous>, transform_indices = @transform_6, window_bounds = array<i64: 1, 128>}, {transform_indices = @transform_7, window_bounds = array<i64: 256, 128>}]} {
    %c0 = arith.constant 0 : index
    %c0_0 = arith.constant 0 : index
    %0 = vector.load %arg1[%c0, %c0_0] : memref<256x784xbf16, #tpu.memory_space<vmem>>, vector<256x784xbf16>
    %c0_1 = arith.constant 0 : index
    %c0_2 = arith.constant 0 : index
    %1 = vector.load %arg2[%c0_1, %c0_2] : memref<784x128xbf16, #tpu.memory_space<vmem>>, vector<784x128xbf16>
    %cst = arith.constant dense<0.000000e+00> : vector<256x128xf32>
    %2 = tpu.matmul %0, %1, %cst {dimension_numbers = #tpu.dot_dimension_numbers<[1], [0], [0], [1], [0, 0, 1, 1], [], []>} : vector<256x784xbf16>, vector<784x128xbf16>, vector<256x128xf32> -> vector<256x128xf32>
    %c0_3 = arith.constant 0 : index
    %c0_4 = arith.constant 0 : index
    %3 = vector.load %arg3[%c0_3, %c0_4] : memref<1x128xf32, #tpu.memory_space<vmem>>, vector<1x128xf32>
    %4 = vector.broadcast %3 : vector<1x128xf32> to vector<256x128xf32>
    %5 = arith.addf %2, %4 : vector<256x128xf32>
    %cst_5 = arith.constant 0.000000e+00 : f32
    %6 = vector.broadcast %cst_5 : f32 to vector<256x128xf32>
    %7 = arith.maximumf %5, %6 : vector<256x128xf32>
    %8 = arith.truncf %7 : vector<256x128xf32> to vector<256x128xbf16>
    %c0_6 = arith.constant 0 : index
    %c0_7 = arith.constant 0 : index
    %9 = vector.load %arg4[%c0_6, %c0_7] : memref<128x128xbf16, #tpu.memory_space<vmem>>, vector<128x128xbf16>
    %cst_8 = arith.constant dense<0.000000e+00> : vector<256x128xf32>
    %10 = tpu.matmul %8, %9, %cst_8 {dimension_numbers = #tpu.dot_dimension_numbers<[1], [0], [0], [1], [0, 0, 1, 1], [], []>} : vector<256x128xbf16>, vector<128x128xbf16>, vector<256x128xf32> -> vector<256x128xf32>
    %c0_9 = arith.constant 0 : index
    %c0_10 = arith.constant 0 : index
    %11 = vector.load %arg5[%c0_9, %c0_10] : memref<1x128xf32, #tpu.memory_space<vmem>>, vector<1x128xf32>
    %12 = vector.broadcast %11 : vector<1x128xf32> to vector<256x128xf32>
    %13 = arith.addf %10, %12 : vector<256x128xf32>
    %cst_11 = arith.constant 0.000000e+00 : f32
    %14 = vector.broadcast %cst_11 : f32 to vector<256x128xf32>
    %15 = arith.maximumf %13, %14 : vector<256x128xf32>
    %16 = arith.truncf %15 : vector<256x128xf32> to vector<256x128xbf16>
    %c0_12 = arith.constant 0 : index
    %c0_13 = arith.constant 0 : index
    %17 = vector.load %arg6[%c0_12, %c0_13] : memref<128x128xbf16, #tpu.memory_space<vmem>>, vector<128x128xbf16>
    %cst_14 = arith.constant dense<0.000000e+00> : vector<256x128xf32>
    %18 = tpu.matmul %16, %17, %cst_14 {dimension_numbers = #tpu.dot_dimension_numbers<[1], [0], [0], [1], [0, 0, 1, 1], [], []>} : vector<256x128xbf16>, vector<128x128xbf16>, vector<256x128xf32> -> vector<256x128xf32>
    %c0_15 = arith.constant 0 : index
    %c0_16 = arith.constant 0 : index
    %19 = vector.load %arg7[%c0_15, %c0_16] : memref<1x128xf32, #tpu.memory_space<vmem>>, vector<1x128xf32>
    %20 = vector.broadcast %19 : vector<1x128xf32> to vector<256x128xf32>
    %21 = arith.addf %18, %20 : vector<256x128xf32>
    %c0_17 = arith.constant 0 : index
    %c0_18 = arith.constant 0 : index
    %22 = vector.load %arg8[%c0_17, %c0_18] : memref<256x128xf32, #tpu.memory_space<vmem>>, vector<256x128xf32>
    tpu.vector_store %arg8[%c0_17, %c0_18], %21 {strides = array<i32>} : memref<256x128xf32, #tpu.memory_space<vmem>>, vector<256x128xf32>,
    return
  }
  func.func @transform_0(%arg0: i32) -> (i32, i32) {
    %c0_i32 = arith.constant 0 : i32
    %c0_i32_0 = arith.constant 0 : i32
    return %arg0, %c0_i32 : i32, i32
  }
  func.func @transform_1(%arg0: i32) -> (i32, i32) {
    %c0_i32 = arith.constant 0 : i32
    %c0_i32_0 = arith.constant 0 : i32
    %c0_i32_1 = arith.constant 0 : i32
    return %c0_i32, %c0_i32_0 : i32, i32
  }
  func.func @transform_2(%arg0: i32) -> (i32, i32) {
    %c0_i32 = arith.constant 0 : i32
    %c0_i32_0 = arith.constant 0 : i32
    %c0_i32_1 = arith.constant 0 : i32
    return %c0_i32, %c0_i32_0 : i32, i32
  }
  func.func @transform_3(%arg0: i32) -> (i32, i32) {
    %c0_i32 = arith.constant 0 : i32
    %c0_i32_0 = arith.constant 0 : i32
    %c0_i32_1 = arith.constant 0 : i32
    return %c0_i32, %c0_i32_0 : i32, i32
  }
  func.func @transform_4(%arg0: i32) -> (i32, i32) {
    %c0_i32 = arith.constant 0 : i32
    %c0_i32_0 = arith.constant 0 : i32
    %c0_i32_1 = arith.constant 0 : i32
    return %c0_i32, %c0_i32_0 : i32, i32
  }
  func.func @transform_5(%arg0: i32) -> (i32, i32) {
    %c0_i32 = arith.constant 0 : i32
    %c0_i32_0 = arith.constant 0 : i32
    %c0_i32_1 = arith.constant 0 : i32
    return %c0_i32, %c0_i32_0 : i32, i32
  }
  func.func @transform_6(%arg0: i32) -> (i32, i32) {
    %c0_i32 = arith.constant 0 : i32
    %c0_i32_0 = arith.constant 0 : i32
    %c0_i32_1 = arith.constant 0 : i32
    return %c0_i32, %c0_i32_0 : i32, i32
  }
  func.func @transform_7(%arg0: i32) -> (i32, i32) {
    %c0_i32 = arith.constant 0 : i32
    %c0_i32_0 = arith.constant 0 : i32
    return %arg0, %c0_i32 : i32, i32
  }
}

</mosaic_0001>

<llo_original>
// kernel: tpu_custom_call.1
$region0: #{tpu_custom_call.1}
  #allocation0 [shape = 'u32[]', space=smem, size = 0x4, offset = 0x4, fixed_abs, tag = 'smem constant byte address 0x4 - core index']
  #allocation1 [shape = 'u32[144,128]{1,0:T(1,128)}', space=vmem, size = 0x12000, scoped, tag = 'internal scratch']
  %s0 = inlined_call_operand.hbm [shape: bf16[256,784], index: 0, kind: input, shape index: {}]
  %s1 = inlined_call_operand.hbm [shape: bf16[784,128], index: 1, kind: input, shape index: {}]
  %s2 = inlined_call_operand.hbm [shape: f32[1,128], index: 2, kind: input, shape index: {}]
  %s3 = inlined_call_operand.hbm [shape: bf16[128,128], index: 3, kind: input, shape index: {}]
  %s4 = inlined_call_operand.hbm [shape: f32[1,128], index: 4, kind: input, shape index: {}]
  %s5 = inlined_call_operand.hbm [shape: bf16[128,128], index: 5, kind: input, shape index: {}]
  %s6 = inlined_call_operand.hbm [shape: f32[1,128], index: 6, kind: input, shape index: {}]
  %s7 = inlined_call_operand.hbm [shape: f32[256,128], index: 7, kind: output, shape index: {}]
  %s8 = sld [smem:[#allocation0]]
  $region66: #{tpu_custom_call.1} parent=0
    _
  %s10 = ssub.s32 1, %s8
  %s11 = scalar_select 0, %s10, %s8
  $region1: #{tpu_custom_call.1} parent=0
    #allocation2 [shape = 'u8[458752]{0}', space=vmem, size = 0x70000, scoped, tag = 'input window, operand 0, single buffered']
    #allocation3 [shape = 's32[1]{0}', space=sflag, size = 0x4, scoped, tag = 'scoped memory for tpu_custom_call.1']
    #allocation4 [shape = 's32[1]{0}', space=sflag, size = 0x4, scoped, tag = 'scoped memory for tpu_custom_call.1']
    #allocation5 [shape = 'u8[200704]{0}', space=vmem, size = 0x31000, scoped, tag = 'input window, operand 1, single buffered']
    #allocation6 [shape = 's32[1]{0}', space=sflag, size = 0x4, scoped, tag = 'scoped memory for tpu_custom_call.1']
    #allocation7 [shape = 'u8[512]{0}', space=vmem, size = 0x400, scoped, tag = 'input window, operand 2, single buffered']
    #allocation8 [shape = 'u8[32768]{0}', space=vmem, size = 0x8000, scoped, tag = 'input window, operand 3, single buffered']
    #allocation9 [shape = 's32[1]{0}', space=sflag, size = 0x4, scoped, tag = 'scoped memory for tpu_custom_call.1']
    #allocation10 [shape = 'u8[512]{0}', space=vmem, size = 0x400, scoped, tag = 'input window, operand 4, single buffered']
    #allocation11 [shape = 'u8[32768]{0}', space=vmem, size = 0x8000, scoped, tag = 'input window, operand 5, single buffered']
    #allocation12 [shape = 's32[1]{0}', space=sflag, size = 0x4, scoped, tag = 'scoped memory for tpu_custom_call.1']
    #allocation13 [shape = 'u8[512]{0}', space=vmem, size = 0x400, scoped, tag = 'input window, operand 6, single buffered']
    #allocation14 [shape = 'u8[131072]{0}', space=vmem, size = 0x20000, scoped, tag = 'output window, operand 0, single buffered']
    %12 = vsyncpa [#allocation3], 0
    %13 = vsyncpa [#allocation6], 0
    %14 = vsyncpa [#allocation9], 0
    %15 = vsyncpa [#allocation12], 0
    %16 = vsyncpa [#allocation4], 0
    // Predicated region
    $region2: #{tpu_custom_call.1} parent=1 // pred_check
      _
    $region3: #{tpu_custom_call.1} parent=1 // pred_check_branch
      %18 = sbr.rel (0) target = $region5
    $region4: #{tpu_custom_call.1} parent=1 // pred_region
      %s20 = ssub.s32 14336, 14336
      %21 = vsyncadd [#allocation3], %s20
      %s22 = sshll.u32 [#allocation2], 4
      %s23 = int_to_ptr.vmem [resolvable:$true] %s22
      %28 = dma.hbm_to_vmem [thread:$0]  %s0, 14336, %s23, [#allocation3], 448, 448, 28
    $region5: #{tpu_custom_call.1} parent=1 // pred_fallthru
      _
    // Predicated region
    $region6: #{tpu_custom_call.1} parent=1 // pred_check
      _
    $region7: #{tpu_custom_call.1} parent=1 // pred_check_branch
      %30 = sbr.rel (0) target = $region9
    $region8: #{tpu_custom_call.1} parent=1 // pred_region
      %s32 = ssub.s32 6272, 6272
      %33 = vsyncadd [#allocation6], %s32
      %s34 = sshll.u32 [#allocation5], 4
      %s35 = int_to_ptr.vmem [resolvable:$true] %s34
      %40 = dma.hbm_to_vmem [thread:$0]  %s1, 6272, %s35, [#allocation6], 64, 64, 4
    $region9: #{tpu_custom_call.1} parent=1 // pred_fallthru
      _
    // Predicated region
    $region10: #{tpu_custom_call.1} parent=1 // pred_check
      _
    $region11: #{tpu_custom_call.1} parent=1 // pred_check_branch
      %42 = sbr.rel (0) target = $region13
    $region12: #{tpu_custom_call.1} parent=1 // pred_region
      %s44 = ssub.s32 16, 16
      %45 = vsyncadd [#allocation6], %s44
      %s47 = sshll.u32 [#allocation7], 4
      %s48 = int_to_ptr.vmem [resolvable:$true] %s47
      %50 = dma.hbm_to_vmem [thread:$0]  %s2, 16, %s48, [#allocation6]
    $region13: #{tpu_custom_call.1} parent=1 // pred_fallthru
      _
    // Predicated region
    $region14: #{tpu_custom_call.1} parent=1 // pred_check
      _
    $region15: #{tpu_custom_call.1} parent=1 // pred_check_branch
      %52 = sbr.rel (0) target = $region17
    $region16: #{tpu_custom_call.1} parent=1 // pred_region
      %s54 = ssub.s32 1024, 1024
      %55 = vsyncadd [#allocation9], %s54
      %s56 = sshll.u32 [#allocation8], 4
      %s57 = int_to_ptr.vmem [resolvable:$true] %s56
      %62 = dma.hbm_to_vmem [thread:$0]  %s3, 1024, %s57, [#allocation9], 64, 64, 4
    $region17: #{tpu_custom_call.1} parent=1 // pred_fallthru
      _
    // Predicated region
    $region18: #{tpu_custom_call.1} parent=1 // pred_check
      _
    $region19: #{tpu_custom_call.1} parent=1 // pred_check_branch
      %64 = sbr.rel (0) target = $region21
    $region20: #{tpu_custom_call.1} parent=1 // pred_region
      %s66 = ssub.s32 16, 16
      %67 = vsyncadd [#allocation9], %s66
      %s69 = sshll.u32 [#allocation10], 4
      %s70 = int_to_ptr.vmem [resolvable:$true] %s69
      %72 = dma.hbm_to_vmem [thread:$0]  %s4, 16, %s70, [#allocation9]
    $region21: #{tpu_custom_call.1} parent=1 // pred_fallthru
      _
    // Predicated region
    $region22: #{tpu_custom_call.1} parent=1 // pred_check
      _
    $region23: #{tpu_custom_call.1} parent=1 // pred_check_branch
      %74 = sbr.rel (0) target = $region25
    $region24: #{tpu_custom_call.1} parent=1 // pred_region
      %s76 = ssub.s32 1024, 1024
      %77 = vsyncadd [#allocation12], %s76
      %s78 = sshll.u32 [#allocation11], 4
      %s79 = int_to_ptr.vmem [resolvable:$true] %s78
      %84 = dma.hbm_to_vmem [thread:$0]  %s5, 1024, %s79, [#allocation12], 64, 64, 4
    $region25: #{tpu_custom_call.1} parent=1 // pred_fallthru
      _
    // Predicated region
    $region26: #{tpu_custom_call.1} parent=1 // pred_check
      _
    $region27: #{tpu_custom_call.1} parent=1 // pred_check_branch
      %86 = sbr.rel (0) target = $region29
    $region28: #{tpu_custom_call.1} parent=1 // pred_region
      %s88 = ssub.s32 16, 16
      %89 = vsyncadd [#allocation12], %s88
      %s91 = sshll.u32 [#allocation13], 4
      %s92 = int_to_ptr.vmem [resolvable:$true] %s91
      %94 = dma.hbm_to_vmem [thread:$0]  %s6, 16, %s92, [#allocation12]
    $region29: #{tpu_custom_call.1} parent=1 // pred_fallthru
      _
    // Predicated region
    $region30: #{tpu_custom_call.1} parent=1 // pred_check
      _
    $region31: #{tpu_custom_call.1} parent=1 // pred_check_branch
      %96 = sbr.rel (0) target = $region33
    $region32: #{tpu_custom_call.1} parent=1 // pred_region
      %97 = dma.done [#allocation3], 14336
    $region33: #{tpu_custom_call.1} parent=1 // pred_fallthru
      _
    // Predicated region
    $region34: #{tpu_custom_call.1} parent=1 // pred_check
      _
    $region35: #{tpu_custom_call.1} parent=1 // pred_check_branch
      %99 = sbr.rel (0) target = $region37
    $region36: #{tpu_custom_call.1} parent=1 // pred_region
      %100 = dma.done [#allocation6], 6272
    $region37: #{tpu_custom_call.1} parent=1 // pred_fallthru
      _
    // Predicated region
    $region38: #{tpu_custom_call.1} parent=1 // pred_check
      _
    $region39: #{tpu_custom_call.1} parent=1 // pred_check_branch
      %102 = sbr.rel (0) target = $region41
    $region40: #{tpu_custom_call.1} parent=1 // pred_region
      %103 = dma.done [#allocation6], 16
    $region41: #{tpu_custom_call.1} parent=1 // pred_fallthru
      _
    // Predicated region
    $region42: #{tpu_custom_call.1} parent=1 // pred_check
      _
    $region43: #{tpu_custom_call.1} parent=1 // pred_check_branch
      %105 = sbr.rel (0) target = $region45
    $region44: #{tpu_custom_call.1} parent=1 // pred_region
      %106 = dma.done [#allocation9], 1024
    $region45: #{tpu_custom_call.1} parent=1 // pred_fallthru
      _
    // Predicated region
    $region46: #{tpu_custom_call.1} parent=1 // pred_check
      _
    $region47: #{tpu_custom_call.1} parent=1 // pred_check_branch
      %108 = sbr.rel (0) target = $region49
    $region48: #{tpu_custom_call.1} parent=1 // pred_region
      %109 = dma.done [#allocation9], 16
    $region49: #{tpu_custom_call.1} parent=1 // pred_fallthru
      _
    // Predicated region
    $region50: #{tpu_custom_call.1} parent=1 // pred_check
      _
    $region51: #{tpu_custom_call.1} parent=1 // pred_check_branch
      %111 = sbr.rel (0) target = $region53
    $region52: #{tpu_custom_call.1} parent=1 // pred_region
      %112 = dma.done [#allocation12], 1024
    $region53: #{tpu_custom_call.1} parent=1 // pred_fallthru
      _
    // Predicated region
    $region54: #{tpu_custom_call.1} parent=1 // pred_check
      _
    $region55: #{tpu_custom_call.1} parent=1 // pred_check_branch
      %114 = sbr.rel (0) target = $region57
    $region56: #{tpu_custom_call.1} parent=1 // pred_region
      %115 = dma.done [#allocation12], 16
    $region57: #{tpu_custom_call.1} parent=1 // pred_fallthru
      _
    %v117 = vld [vmem:[#allocation2] sm:$0xff]
    %v118 = vld [vmem:[#allocation2 + $0x8] sm:$0xff]
    %v119 = vld [vmem:[#allocation2 + $0x10] sm:$0xff]
    %v120 = vld [vmem:[#allocation2 + $0x18] sm:$0xf]
    %v121 = vld [vmem:[#allocation2 + $0x1c] sm:$0xff]
    %v122 = vld [vmem:[#allocation2 + $0x24] sm:$0xff]
    %v123 = vld [vmem:[#allocation2 + $0x2c] sm:$0xff]
    %v124 = vld [vmem:[#allocation2 + $0x34] sm:$0xf]
    %v125 = vld [vmem:[#allocation2 + $0x38] sm:$0xff]
    %v126 = vld [vmem:[#allocation2 + $0x40] sm:$0xff]
    %v127 = vld [vmem:[#allocation2 + $0x48] sm:$0xff]
    %v128 = vld [vmem:[#allocation2 + $0x50] sm:$0xf]
    %v129 = vld [vmem:[#allocation2 + $0x54] sm:$0xff]
    %v130 = vld [vmem:[#allocation2 + $0x5c] sm:$0xff]
    %v131 = vld [vmem:[#allocation2 + $0x64] sm:$0xff]
    %v132 = vld [vmem:[#allocation2 + $0x6c] sm:$0xf]
    %v133 = vld [vmem:[#allocation2 + $0x70] sm:$0xff]
    %v134 = vld [vmem:[#allocation2 + $0x78] sm:$0xff]
    %v135 = vld [vmem:[#allocation2 + $0x80] sm:$0xff]
    %v136 = vld [vmem:[#allocation2 + $0x88] sm:$0xf]
    %v137 = vld [vmem:[#allocation2 + $0x8c] sm:$0xff]
    %v138 = vld [vmem:[#allocation2 + $0x94] sm:$0xff]
    %v139 = vld [vmem:[#allocation2 + $0x9c] sm:$0xff]
    %v140 = vld [vmem:[#allocation2 + $0xa4] sm:$0xf]
    %v141 = vld [vmem:[#allocation2 + $0xa8] sm:$0xff]
    %v142 = vld [vmem:[#allocation2 + $0xb0] sm:$0xff]
    %v143 = vld [vmem:[#allocation2 + $0xb8] sm:$0xff]
    %v144 = vld [vmem:[#allocation2 + $0xc0] sm:$0xf]
    %v145 = vld [vmem:[#allocation2 + $0xc4] sm:$0xff]
    %v146 = vld [vmem:[#allocation2 + $0xcc] sm:$0xff]
    %v147 = vld [vmem:[#allocation2 + $0xd4] sm:$0xff]
    %v148 = vld [vmem:[#allocation2 + $0xdc] sm:$0xf]
    %v149 = vld [vmem:[#allocation2 + $0xe0] sm:$0xff]
    %v150 = vld [vmem:[#allocation2 + $0xe8] sm:$0xff]
    %v151 = vld [vmem:[#allocation2 + $0xf0] sm:$0xff]
    %v152 = vld [vmem:[#allocation2 + $0xf8] sm:$0xf]
    %v153 = vld [vmem:[#allocation2 + $0xfc] sm:$0xff]
    %v154 = vld [vmem:[#allocation2 + $0x104] sm:$0xff]
    %v155 = vld [vmem:[#allocation2 + $0x10c] sm:$0xff]
    %v156 = vld [vmem:[#allocation2 + $0x114] sm:$0xf]
    %v157 = vld [vmem:[#allocation2 + $0x118] sm:$0xff]
    %v158 = vld [vmem:[#allocation2 + $0x120] sm:$0xff]
    %v159 = vld [vmem:[#allocation2 + $0x128] sm:$0xff]
    %v160 = vld [vmem:[#allocation2 + $0x130] sm:$0xf]
    %v161 = vld [vmem:[#allocation2 + $0x134] sm:$0xff]
    %v162 = vld [vmem:[#allocation2 + $0x13c] sm:$0xff]
    %v163 = vld [vmem:[#allocation2 + $0x144] sm:$0xff]
    %v164 = vld [vmem:[#allocation2 + $0x14c] sm:$0xf]
    %v165 = vld [vmem:[#allocation2 + $0x150] sm:$0xff]
    %v166 = vld [vmem:[#allocation2 + $0x158] sm:$0xff]
    %v167 = vld [vmem:[#allocation2 + $0x160] sm:$0xff]
    %v168 = vld [vmem:[#allocation2 + $0x168] sm:$0xf]
    %v169 = vld [vmem:[#allocation2 + $0x16c] sm:$0xff]
    %v170 = vld [vmem:[#allocation2 + $0x174] sm:$0xff]
    %v171 = vld [vmem:[#allocation2 + $0x17c] sm:$0xff]
    %v172 = vld [vmem:[#allocation2 + $0x184] sm:$0xf]
    %v173 = vld [vmem:[#allocation2 + $0x188] sm:$0xff]
    %v174 = vld [vmem:[#allocation2 + $0x190] sm:$0xff]
    %v175 = vld [vmem:[#allocation2 + $0x198] sm:$0xff]
    %v176 = vld [vmem:[#allocation2 + $0x1a0] sm:$0xf]
    %v177 = vld [vmem:[#allocation2 + $0x1a4] sm:$0xff]
    %v178 = vld [vmem:[#allocation2 + $0x1ac] sm:$0xff]
    %v179 = vld [vmem:[#allocation2 + $0x1b4] sm:$0xff]
    %v180 = vld [vmem:[#allocation2 + $0x1bc] sm:$0xf]
    %v181 = vld [vmem:[#allocation2 + $0x1c0] sm:$0xff]
    %v182 = vld [vmem:[#allocation2 + $0x1c8] sm:$0xff]
    %v183 = vld [vmem:[#allocation2 + $0x1d0] sm:$0xff]
    %v184 = vld [vmem:[#allocation2 + $0x1d8] sm:$0xf]
    %v185 = vld [vmem:[#allocation2 + $0x1dc] sm:$0xff]
    %v186 = vld [vmem:[#allocation2 + $0x1e4] sm:$0xff]
    %v187 = vld [vmem:[#allocation2 + $0x1ec] sm:$0xff]
    %v188 = vld [vmem:[#allocation2 + $0x1f4] sm:$0xf]
    %v189 = vld [vmem:[#allocation2 + $0x1f8] sm:$0xff]
    %v190 = vld [vmem:[#allocation2 + $0x200] sm:$0xff]
    %v191 = vld [vmem:[#allocation2 + $0x208] sm:$0xff]
    %v192 = vld [vmem:[#allocation2 + $0x210] sm:$0xf]
    %v193 = vld [vmem:[#allocation2 + $0x214] sm:$0xff]
    %v194 = vld [vmem:[#allocation2 + $0x21c] sm:$0xff]
    %v195 = vld [vmem:[#allocation2 + $0x224] sm:$0xff]
    %v196 = vld [vmem:[#allocation2 + $0x22c] sm:$0xf]
    %v197 = vld [vmem:[#allocation2 + $0x230] sm:$0xff]
    %v198 = vld [vmem:[#allocation2 + $0x238] sm:$0xff]
    %v199 = vld [vmem:[#allocation2 + $0x240] sm:$0xff]
    %v200 = vld [vmem:[#allocation2 + $0x248] sm:$0xf]
    %v201 = vld [vmem:[#allocation2 + $0x24c] sm:$0xff]
    %v202 = vld [vmem:[#allocation2 + $0x254] sm:$0xff]
    %v203 = vld [vmem:[#allocation2 + $0x25c] sm:$0xff]
    %v204 = vld [vmem:[#allocation2 + $0x264] sm:$0xf]
    %v205 = vld [vmem:[#allocation2 + $0x268] sm:$0xff]
    %v206 = vld [vmem:[#allocation2 + $0x270] sm:$0xff]
    %v207 = vld [vmem:[#allocation2 + $0x278] sm:$0xff]
    %v208 = vld [vmem:[#allocation2 + $0x280] sm:$0xf]
    %v209 = vld [vmem:[#allocation2 + $0x284] sm:$0xff]
    %v210 = vld [vmem:[#allocation2 + $0x28c] sm:$0xff]
    %v211 = vld [vmem:[#allocation2 + $0x294] sm:$0xff]
    %v212 = vld [vmem:[#allocation2 + $0x29c] sm:$0xf]
    %v213 = vld [vmem:[#allocation2 + $0x2a0] sm:$0xff]
    %v214 = vld [vmem:[#allocation2 + $0x2a8] sm:$0xff]
    %v215 = vld [vmem:[#allocation2 + $0x2b0] sm:$0xff]
    %v216 = vld [vmem:[#allocation2 + $0x2b8] sm:$0xf]
    %v217 = vld [vmem:[#allocation2 + $0x2bc] sm:$0xff]
    %v218 = vld [vmem:[#allocation2 + $0x2c4] sm:$0xff]
    %v219 = vld [vmem:[#allocation2 + $0x2cc] sm:$0xff]
    %v220 = vld [vmem:[#allocation2 + $0x2d4] sm:$0xf]
    %v221 = vld [vmem:[#allocation2 + $0x2d8] sm:$0xff]
    %v222 = vld [vmem:[#allocation2 + $0x2e0] sm:$0xff]
    %v223 = vld [vmem:[#allocation2 + $0x2e8] sm:$0xff]
    %v224 = vld [vmem:[#allocation2 + $0x2f0] sm:$0xf]
    %v225 = vld [vmem:[#allocation2 + $0x2f4] sm:$0xff]
    %v226 = vld [vmem:[#allocation2 + $0x2fc] sm:$0xff]
    %v227 = vld [vmem:[#allocation2 + $0x304] sm:$0xff]
    %v228 = vld [vmem:[#allocation2 + $0x30c] sm:$0xf]
    %v229 = vld [vmem:[#allocation2 + $0x310] sm:$0xff]
    %v230 = vld [vmem:[#allocation2 + $0x318] sm:$0xff]
    %v231 = vld [vmem:[#allocation2 + $0x320] sm:$0xff]
    %v232 = vld [vmem:[#allocation2 + $0x328] sm:$0xf]
    %v233 = vld [vmem:[#allocation2 + $0x32c] sm:$0xff]
    %v234 = vld [vmem:[#allocation2 + $0x334] sm:$0xff]
    %v235 = vld [vmem:[#allocation2 + $0x33c] sm:$0xff]
    %v236 = vld [vmem:[#allocation2 + $0x344] sm:$0xf]
    %v237 = vld [vmem:[#allocation2 + $0x348] sm:$0xff]
    %v238 = vld [vmem:[#allocation2 + $0x350] sm:$0xff]
    %v239 = vld [vmem:[#allocation2 + $0x358] sm:$0xff]
    %v240 = vld [vmem:[#allocation2 + $0x360] sm:$0xf]
    %v241 = vld [vmem:[#allocation2 + $0x364] sm:$0xff]
    %v242 = vld [vmem:[#allocation2 + $0x36c] sm:$0xff]
    %v243 = vld [vmem:[#allocation2 + $0x374] sm:$0xff]
    %v244 = vld [vmem:[#allocation2 + $0x37c] sm:$0xf]
    %v245 = vld [vmem:[#allocation5] sm:$0xf]
    %v246 = vld [vmem:[#allocation5 + $0x4] sm:$0xf]
    %v247 = vld [vmem:[#allocation5 + $0x8] sm:$0xf]
    %v248 = vld [vmem:[#allocation5 + $0xc] sm:$0xf]
    %v249 = vld [vmem:[#allocation5 + $0x10] sm:$0xf]
    %v250 = vld [vmem:[#allocation5 + $0x14] sm:$0xf]
    %v251 = vld [vmem:[#allocation5 + $0x18] sm:$0xf]
    %v252 = vld [vmem:[#allocation5 + $0x1c] sm:$0xf]
    %v253 = vld [vmem:[#allocation5 + $0x20] sm:$0xf]
    %v254 = vld [vmem:[#allocation5 + $0x24] sm:$0xf]
    %v255 = vld [vmem:[#allocation5 + $0x28] sm:$0xf]
    %v256 = vld [vmem:[#allocation5 + $0x2c] sm:$0xf]
    %v257 = vld [vmem:[#allocation5 + $0x30] sm:$0xf]
    %v258 = vld [vmem:[#allocation5 + $0x34] sm:$0xf]
    %v259 = vld [vmem:[#allocation5 + $0x38] sm:$0xf]
    %v260 = vld [vmem:[#allocation5 + $0x3c] sm:$0xf]
    %v261 = vld [vmem:[#allocation5 + $0x40] sm:$0xf]
    %v262 = vld [vmem:[#allocation5 + $0x44] sm:$0xf]
    %v263 = vld [vmem:[#allocation5 + $0x48] sm:$0xf]
    %v264 = vld [vmem:[#allocation5 + $0x4c] sm:$0xf]
    %v265 = vld [vmem:[#allocation5 + $0x50] sm:$0xf]
    %v266 = vld [vmem:[#allocation5 + $0x54] sm:$0xf]
    %v267 = vld [vmem:[#allocation5 + $0x58] sm:$0xf]
    %v268 = vld [vmem:[#allocation5 + $0x5c] sm:$0xf]
    %v269 = vld [vmem:[#allocation5 + $0x60] sm:$0xf]
    %v270 = vld [vmem:[#allocation5 + $0x64] sm:$0xf]
    %v271 = vld [vmem:[#allocation5 + $0x68] sm:$0xf]
    %v272 = vld [vmem:[#allocation5 + $0x6c] sm:$0xf]
    %v273 = vld [vmem:[#allocation5 + $0x70] sm:$0xf]
    %v274 = vld [vmem:[#allocation5 + $0x74] sm:$0xf]
    %v275 = vld [vmem:[#allocation5 + $0x78] sm:$0xf]
    %v276 = vld [vmem:[#allocation5 + $0x7c] sm:$0xf]
    %v277 = vld [vmem:[#allocation5 + $0x80] sm:$0xf]
    %v278 = vld [vmem:[#allocation5 + $0x84] sm:$0xf]
    %v279 = vld [vmem:[#allocation5 + $0x88] sm:$0xf]
    %v280 = vld [vmem:[#allocation5 + $0x8c] sm:$0xf]
    %v281 = vld [vmem:[#allocation5 + $0x90] sm:$0xf]
    %v282 = vld [vmem:[#allocation5 + $0x94] sm:$0xf]
    %v283 = vld [vmem:[#allocation5 + $0x98] sm:$0xf]
    %v284 = vld [vmem:[#allocation5 + $0x9c] sm:$0xf]
    %v285 = vld [vmem:[#allocation5 + $0xa0] sm:$0xf]
    %v286 = vld [vmem:[#allocation5 + $0xa4] sm:$0xf]
    %v287 = vld [vmem:[#allocation5 + $0xa8] sm:$0xf]
    %v288 = vld [vmem:[#allocation5 + $0xac] sm:$0xf]
    %v289 = vld [vmem:[#allocation5 + $0xb0] sm:$0xf]
    %v290 = vld [vmem:[#allocation5 + $0xb4] sm:$0xf]
    %v291 = vld [vmem:[#allocation5 + $0xb8] sm:$0xf]
    %v292 = vld [vmem:[#allocation5 + $0xbc] sm:$0xf]
    %v293 = vld [vmem:[#allocation5 + $0xc0] sm:$0xf]
    %v294 = vld [vmem:[#allocation5 + $0xc4] sm:$0xf]
    %v295 = vld [vmem:[#allocation5 + $0xc8] sm:$0xf]
    %v296 = vld [vmem:[#allocation5 + $0xcc] sm:$0xf]
    %v297 = vld [vmem:[#allocation5 + $0xd0] sm:$0xf]
    %v298 = vld [vmem:[#allocation5 + $0xd4] sm:$0xf]
    %v299 = vld [vmem:[#allocation5 + $0xd8] sm:$0xf]
    %v300 = vld [vmem:[#allocation5 + $0xdc] sm:$0xf]
    %v301 = vld [vmem:[#allocation5 + $0xe0] sm:$0xf]
    %v302 = vld [vmem:[#allocation5 + $0xe4] sm:$0xf]
    %v303 = vld [vmem:[#allocation5 + $0xe8] sm:$0xf]
    %v304 = vld [vmem:[#allocation5 + $0xec] sm:$0xf]
    %v305 = vld [vmem:[#allocation5 + $0xf0] sm:$0xf]
    %v306 = vld [vmem:[#allocation5 + $0xf4] sm:$0xf]
    %v307 = vld [vmem:[#allocation5 + $0xf8] sm:$0xf]
    %v308 = vld [vmem:[#allocation5 + $0xfc] sm:$0xf]
    %v309 = vld [vmem:[#allocation5 + $0x100] sm:$0xf]
    %v310 = vld [vmem:[#allocation5 + $0x104] sm:$0xf]
    %v311 = vld [vmem:[#allocation5 + $0x108] sm:$0xf]
    %v312 = vld [vmem:[#allocation5 + $0x10c] sm:$0xf]
    %v313 = vld [vmem:[#allocation5 + $0x110] sm:$0xf]
    %v314 = vld [vmem:[#allocation5 + $0x114] sm:$0xf]
    %v315 = vld [vmem:[#allocation5 + $0x118] sm:$0xf]
    %v316 = vld [vmem:[#allocation5 + $0x11c] sm:$0xf]
    %v317 = vld [vmem:[#allocation5 + $0x120] sm:$0xf]
    %v318 = vld [vmem:[#allocation5 + $0x124] sm:$0xf]
    %v319 = vld [vmem:[#allocation5 + $0x128] sm:$0xf]
    %v320 = vld [vmem:[#allocation5 + $0x12c] sm:$0xf]
    %v321 = vld [vmem:[#allocation5 + $0x130] sm:$0xf]
    %v322 = vld [vmem:[#allocation5 + $0x134] sm:$0xf]
    %v323 = vld [vmem:[#allocation5 + $0x138] sm:$0xf]
    %v324 = vld [vmem:[#allocation5 + $0x13c] sm:$0xf]
    %v325 = vld [vmem:[#allocation5 + $0x140] sm:$0xf]
    %v326 = vld [vmem:[#allocation5 + $0x144] sm:$0xf]
    %v327 = vld [vmem:[#allocation5 + $0x148] sm:$0xf]
    %v328 = vld [vmem:[#allocation5 + $0x14c] sm:$0xf]
    %v329 = vld [vmem:[#allocation5 + $0x150] sm:$0xf]
    %v330 = vld [vmem:[#allocation5 + $0x154] sm:$0xf]
    %v331 = vld [vmem:[#allocation5 + $0x158] sm:$0xf]
    %v332 = vld [vmem:[#allocation5 + $0x15c] sm:$0xf]
    %v333 = vld [vmem:[#allocation5 + $0x160] sm:$0xf]
    %v334 = vld [vmem:[#allocation5 + $0x164] sm:$0xf]
    %v335 = vld [vmem:[#allocation5 + $0x168] sm:$0xf]
    %v336 = vld [vmem:[#allocation5 + $0x16c] sm:$0xf]
    %v337 = vld [vmem:[#allocation5 + $0x170] sm:$0xf]
    %v338 = vld [vmem:[#allocation5 + $0x174] sm:$0xf]
    %v339 = vld [vmem:[#allocation5 + $0x178] sm:$0xf]
    %v340 = vld [vmem:[#allocation5 + $0x17c] sm:$0xf]
    %v341 = vld [vmem:[#allocation5 + $0x180] sm:$0xf]
    %v342 = vld [vmem:[#allocation5 + $0x184] sm:$0xf]
    %v343 = vld [vmem:[#allocation7] sm:$0x1]
    %v345 = vlaneseq
    %v346 = vshrl.u32 %v345, 7
    %v347 = vsub.s32 0, %v346
    %v348 = vrot.slane %v343, %v347
    %v478 = vunpack.c.l.b16 %v117
    %v479 = vunpack.c.h.b16 %v117
    %v480 = vunpack.c.l.b16 %v118
    %v481 = vunpack.c.h.b16 %v118
    %v482 = vunpack.c.l.b16 %v119
    %v483 = vunpack.c.h.b16 %v119
    %v484 = vunpack.c.l.b16 %v120
    %v485 = vunpack.c.l.b16 %v121
    %v486 = vunpack.c.h.b16 %v121
    %v487 = vunpack.c.l.b16 %v122
    %v488 = vunpack.c.h.b16 %v122
    %v489 = vunpack.c.l.b16 %v123
    %v490 = vunpack.c.h.b16 %v123
    %v491 = vunpack.c.l.b16 %v124
    %v492 = vunpack.c.l.b16 %v125
    %v493 = vunpack.c.h.b16 %v125
    %v494 = vunpack.c.l.b16 %v126
    %v495 = vunpack.c.h.b16 %v126
    %v496 = vunpack.c.l.b16 %v127
    %v497 = vunpack.c.h.b16 %v127
    %v498 = vunpack.c.l.b16 %v128
    %v499 = vunpack.c.l.b16 %v129
    %v500 = vunpack.c.h.b16 %v129
    %v501 = vunpack.c.l.b16 %v130
    %v502 = vunpack.c.h.b16 %v130
    %v503 = vunpack.c.l.b16 %v131
    %v504 = vunpack.c.h.b16 %v131
    %v505 = vunpack.c.l.b16 %v132
    %v506 = vunpack.c.l.b16 %v133
    %v507 = vunpack.c.h.b16 %v133
    %v508 = vunpack.c.l.b16 %v134
    %v509 = vunpack.c.h.b16 %v134
    %v510 = vunpack.c.l.b16 %v135
    %v511 = vunpack.c.h.b16 %v135
    %v512 = vunpack.c.l.b16 %v136
    %v513 = vunpack.c.l.b16 %v137
    %v514 = vunpack.c.h.b16 %v137
    %v515 = vunpack.c.l.b16 %v138
    %v516 = vunpack.c.h.b16 %v138
    %v517 = vunpack.c.l.b16 %v139
    %v518 = vunpack.c.h.b16 %v139
    %v519 = vunpack.c.l.b16 %v140
    %v520 = vunpack.c.l.b16 %v141
    %v521 = vunpack.c.h.b16 %v141
    %v522 = vunpack.c.l.b16 %v142
    %v523 = vunpack.c.h.b16 %v142
    %v524 = vunpack.c.l.b16 %v143
    %v525 = vunpack.c.h.b16 %v143
    %v526 = vunpack.c.l.b16 %v144
    %v527 = vunpack.c.l.b16 %v145
    %v528 = vunpack.c.h.b16 %v145
    %v529 = vunpack.c.l.b16 %v146
    %v530 = vunpack.c.h.b16 %v146
    %v531 = vunpack.c.l.b16 %v147
    %v532 = vunpack.c.h.b16 %v147
    %v533 = vunpack.c.l.b16 %v148
    %v534 = vunpack.c.l.b16 %v149
    %v535 = vunpack.c.h.b16 %v149
    %v536 = vunpack.c.l.b16 %v150
    %v537 = vunpack.c.h.b16 %v150
    %v538 = vunpack.c.l.b16 %v151
    %v539 = vunpack.c.h.b16 %v151
    %v540 = vunpack.c.l.b16 %v152
    %v541 = vunpack.c.l.b16 %v153
    %v542 = vunpack.c.h.b16 %v153
    %v543 = vunpack.c.l.b16 %v154
    %v544 = vunpack.c.h.b16 %v154
    %v545 = vunpack.c.l.b16 %v155
    %v546 = vunpack.c.h.b16 %v155
    %v547 = vunpack.c.l.b16 %v156
    %v548 = vunpack.c.l.b16 %v157
    %v549 = vunpack.c.h.b16 %v157
    %v550 = vunpack.c.l.b16 %v158
    %v551 = vunpack.c.h.b16 %v158
    %v552 = vunpack.c.l.b16 %v159
    %v553 = vunpack.c.h.b16 %v159
    %v554 = vunpack.c.l.b16 %v160
    %v555 = vunpack.c.l.b16 %v161
    %v556 = vunpack.c.h.b16 %v161
    %v557 = vunpack.c.l.b16 %v162
    %v558 = vunpack.c.h.b16 %v162
    %v559 = vunpack.c.l.b16 %v163
    %v560 = vunpack.c.h.b16 %v163
    %v561 = vunpack.c.l.b16 %v164
    %v562 = vunpack.c.l.b16 %v165
    %v563 = vunpack.c.h.b16 %v165
    %v564 = vunpack.c.l.b16 %v166
    %v565 = vunpack.c.h.b16 %v166
    %v566 = vunpack.c.l.b16 %v167
    %v567 = vunpack.c.h.b16 %v167
    %v568 = vunpack.c.l.b16 %v168
    %v569 = vunpack.c.l.b16 %v169
    %v570 = vunpack.c.h.b16 %v169
    %v571 = vunpack.c.l.b16 %v170
    %v572 = vunpack.c.h.b16 %v170
    %v573 = vunpack.c.l.b16 %v171
    %v574 = vunpack.c.h.b16 %v171
    %v575 = vunpack.c.l.b16 %v172
    %v576 = vunpack.c.l.b16 %v173
    %v577 = vunpack.c.h.b16 %v173
    %v578 = vunpack.c.l.b16 %v174
    %v579 = vunpack.c.h.b16 %v174
    %v580 = vunpack.c.l.b16 %v175
    %v581 = vunpack.c.h.b16 %v175
    %v582 = vunpack.c.l.b16 %v176
    %v583 = vunpack.c.l.b16 %v177
    %v584 = vunpack.c.h.b16 %v177
    %v585 = vunpack.c.l.b16 %v178
    %v586 = vunpack.c.h.b16 %v178
    %v587 = vunpack.c.l.b16 %v179
    %v588 = vunpack.c.h.b16 %v179
    %v589 = vunpack.c.l.b16 %v180
    %v590 = vunpack.c.l.b16 %v181
    %v591 = vunpack.c.h.b16 %v181
    %v592 = vunpack.c.l.b16 %v182
    %v593 = vunpack.c.h.b16 %v182
    %v594 = vunpack.c.l.b16 %v183
    %v595 = vunpack.c.h.b16 %v183
    %v596 = vunpack.c.l.b16 %v184
    %v597 = vunpack.c.l.b16 %v185
    %v598 = vunpack.c.h.b16 %v185
    %v599 = vunpack.c.l.b16 %v186
    %v600 = vunpack.c.h.b16 %v186
    %v601 = vunpack.c.l.b16 %v187
    %v602 = vunpack.c.h.b16 %v187
    %v603 = vunpack.c.l.b16 %v188
    %v604 = vunpack.c.l.b16 %v189
    %v605 = vunpack.c.h.b16 %v189
    %v606 = vunpack.c.l.b16 %v190
    %v607 = vunpack.c.h.b16 %v190
    %v608 = vunpack.c.l.b16 %v191
    %v609 = vunpack.c.h.b16 %v191
    %v610 = vunpack.c.l.b16 %v192
    %v611 = vunpack.c.l.b16 %v193
    %v612 = vunpack.c.h.b16 %v193
    %v613 = vunpack.c.l.b16 %v194
    %v614 = vunpack.c.h.b16 %v194
    %v615 = vunpack.c.l.b16 %v195
    %v616 = vunpack.c.h.b16 %v195
    %v617 = vunpack.c.l.b16 %v196
    %v618 = vunpack.c.l.b16 %v197
    %v619 = vunpack.c.h.b16 %v197
    %v620 = vunpack.c.l.b16 %v198
    %v621 = vunpack.c.h.b16 %v198
    %v622 = vunpack.c.l.b16 %v199
    %v623 = vunpack.c.h.b16 %v199
    %v624 = vunpack.c.l.b16 %v200
    %v625 = vunpack.c.l.b16 %v201
    %v626 = vunpack.c.h.b16 %v201
    %v627 = vunpack.c.l.b16 %v202
    %v628 = vunpack.c.h.b16 %v202
    %v629 = vunpack.c.l.b16 %v203
    %v630 = vunpack.c.h.b16 %v203
    %v631 = vunpack.c.l.b16 %v204
    %v632 = vunpack.c.l.b16 %v205
    %v633 = vunpack.c.h.b16 %v205
    %v634 = vunpack.c.l.b16 %v206
    %v635 = vunpack.c.h.b16 %v206
    %v636 = vunpack.c.l.b16 %v207
    %v637 = vunpack.c.h.b16 %v207
    %v638 = vunpack.c.l.b16 %v208
    %v639 = vunpack.c.l.b16 %v209
    %v640 = vunpack.c.h.b16 %v209
    %v641 = vunpack.c.l.b16 %v210
    %v642 = vunpack.c.h.b16 %v210
    %v643 = vunpack.c.l.b16 %v211
    %v644 = vunpack.c.h.b16 %v211
    %v645 = vunpack.c.l.b16 %v212
    %v646 = vunpack.c.l.b16 %v213
    %v647 = vunpack.c.h.b16 %v213
    %v648 = vunpack.c.l.b16 %v214
    %v649 = vunpack.c.h.b16 %v214
    %v650 = vunpack.c.l.b16 %v215
    %v651 = vunpack.c.h.b16 %v215
    %v652 = vunpack.c.l.b16 %v216
    %v653 = vunpack.c.l.b16 %v217
    %v654 = vunpack.c.h.b16 %v217
    %v655 = vunpack.c.l.b16 %v218
    %v656 = vunpack.c.h.b16 %v218
    %v657 = vunpack.c.l.b16 %v219
    %v658 = vunpack.c.h.b16 %v219
    %v659 = vunpack.c.l.b16 %v220
    %v660 = vunpack.c.l.b16 %v221
    %v661 = vunpack.c.h.b16 %v221
    %v662 = vunpack.c.l.b16 %v222
    %v663 = vunpack.c.h.b16 %v222
    %v664 = vunpack.c.l.b16 %v223
    %v665 = vunpack.c.h.b16 %v223
    %v666 = vunpack.c.l.b16 %v224
    %v667 = vunpack.c.l.b16 %v225
    %v668 = vunpack.c.h.b16 %v225
    %v669 = vunpack.c.l.b16 %v226
    %v670 = vunpack.c.h.b16 %v226
    %v671 = vunpack.c.l.b16 %v227
    %v672 = vunpack.c.h.b16 %v227
    %v673 = vunpack.c.l.b16 %v228
    %v674 = vunpack.c.l.b16 %v229
    %v675 = vunpack.c.h.b16 %v229
    %v676 = vunpack.c.l.b16 %v230
    %v677 = vunpack.c.h.b16 %v230
    %v678 = vunpack.c.l.b16 %v231
    %v679 = vunpack.c.h.b16 %v231
    %v680 = vunpack.c.l.b16 %v232
    %v681 = vunpack.c.l.b16 %v233
    %v682 = vunpack.c.h.b16 %v233
    %v683 = vunpack.c.l.b16 %v234
    %v684 = vunpack.c.h.b16 %v234
    %v685 = vunpack.c.l.b16 %v235
    %v686 = vunpack.c.h.b16 %v235
    %v687 = vunpack.c.l.b16 %v236
    %v688 = vunpack.c.l.b16 %v237
    %v689 = vunpack.c.h.b16 %v237
    %v690 = vunpack.c.l.b16 %v238
    %v691 = vunpack.c.h.b16 %v238
    %v692 = vunpack.c.l.b16 %v239
    %v693 = vunpack.c.h.b16 %v239
    %v694 = vunpack.c.l.b16 %v240
    %v695 = vunpack.c.l.b16 %v241
    %v696 = vunpack.c.h.b16 %v241
    %v697 = vunpack.c.l.b16 %v242
    %v698 = vunpack.c.h.b16 %v242
    %v699 = vunpack.c.l.b16 %v243
    %v700 = vunpack.c.h.b16 %v243
    %v701 = vunpack.c.l.b16 %v244
    %v702 = vpack.c.b16 %v485, %v478
    %v703 = vpack.c.b16 %v486, %v479
    %v704 = vpack.c.b16 %v487, %v480
    %v705 = vpack.c.b16 %v488, %v481
    %v706 = vpack.c.b16 %v489, %v482
    %v707 = vpack.c.b16 %v490, %v483
    %v708 = vpack.c.b16 %v491, %v484
    %v709 = vpack.c.b16 %v499, %v492
    %v710 = vpack.c.b16 %v500, %v493
    %v711 = vpack.c.b16 %v501, %v494
    %v712 = vpack.c.b16 %v502, %v495
    %v713 = vpack.c.b16 %v503, %v496
    %v714 = vpack.c.b16 %v504, %v497
    %v715 = vpack.c.b16 %v505, %v498
    %v716 = vpack.c.b16 %v513, %v506
    %v717 = vpack.c.b16 %v514, %v507
    %v718 = vpack.c.b16 %v515, %v508
    %v719 = vpack.c.b16 %v516, %v509
    %v720 = vpack.c.b16 %v517, %v510
    %v721 = vpack.c.b16 %v518, %v511
    %v722 = vpack.c.b16 %v519, %v512
    %v723 = vpack.c.b16 %v527, %v520
    %v724 = vpack.c.b16 %v528, %v521
    %v725 = vpack.c.b16 %v529, %v522
    %v726 = vpack.c.b16 %v530, %v523
    %v727 = vpack.c.b16 %v531, %v524
    %v728 = vpack.c.b16 %v532, %v525
    %v729 = vpack.c.b16 %v533, %v526
    %v730 = vpack.c.b16 %v541, %v534
    %v731 = vpack.c.b16 %v542, %v535
    %v732 = vpack.c.b16 %v543, %v536
    %v733 = vpack.c.b16 %v544, %v537
    %v734 = vpack.c.b16 %v545, %v538
    %v735 = vpack.c.b16 %v546, %v539
    %v736 = vpack.c.b16 %v547, %v540
    %v737 = vpack.c.b16 %v555, %v548
    %v738 = vpack.c.b16 %v556, %v549
    %v739 = vpack.c.b16 %v557, %v550
    %v740 = vpack.c.b16 %v558, %v551
    %v741 = vpack.c.b16 %v559, %v552
    %v742 = vpack.c.b16 %v560, %v553
    %v743 = vpack.c.b16 %v561, %v554
    %v744 = vpack.c.b16 %v569, %v562
    %v745 = vpack.c.b16 %v570, %v563
    %v746 = vpack.c.b16 %v571, %v564
    %v747 = vpack.c.b16 %v572, %v565
    %v748 = vpack.c.b16 %v573, %v566
    %v749 = vpack.c.b16 %v574, %v567
    %v750 = vpack.c.b16 %v575, %v568
    %v751 = vpack.c.b16 %v583, %v576
    %v752 = vpack.c.b16 %v584, %v577
    %v753 = vpack.c.b16 %v585, %v578
    %v754 = vpack.c.b16 %v586, %v579
    %v755 = vpack.c.b16 %v587, %v580
    %v756 = vpack.c.b16 %v588, %v581
    %v757 = vpack.c.b16 %v589, %v582
    %v758 = vpack.c.b16 %v597, %v590
    %v759 = vpack.c.b16 %v598, %v591
    %v760 = vpack.c.b16 %v599, %v592
    %v761 = vpack.c.b16 %v600, %v593
    %v762 = vpack.c.b16 %v601, %v594
    %v763 = vpack.c.b16 %v602, %v595
    %v764 = vpack.c.b16 %v603, %v596
    %v765 = vpack.c.b16 %v611, %v604
    %v766 = vpack.c.b16 %v612, %v605
    %v767 = vpack.c.b16 %v613, %v606
    %v768 = vpack.c.b16 %v614, %v607
    %v769 = vpack.c.b16 %v615, %v608
    %v770 = vpack.c.b16 %v616, %v609
    %v771 = vpack.c.b16 %v617, %v610
    %v772 = vpack.c.b16 %v625, %v618
    %v773 = vpack.c.b16 %v626, %v619
    %v774 = vpack.c.b16 %v627, %v620
    %v775 = vpack.c.b16 %v628, %v621
    %v776 = vpack.c.b16 %v629, %v622
    %v777 = vpack.c.b16 %v630, %v623
    %v778 = vpack.c.b16 %v631, %v624
    %v779 = vpack.c.b16 %v639, %v632
    %v780 = vpack.c.b16 %v640, %v633
    %v781 = vpack.c.b16 %v641, %v634
    %v782 = vpack.c.b16 %v642, %v635
    %v783 = vpack.c.b16 %v643, %v636
    %v784 = vpack.c.b16 %v644, %v637
    %v785 = vpack.c.b16 %v645, %v638
    %v786 = vpack.c.b16 %v653, %v646
    %v787 = vpack.c.b16 %v654, %v647
    %v788 = vpack.c.b16 %v655, %v648
    %v789 = vpack.c.b16 %v656, %v649
    %v790 = vpack.c.b16 %v657, %v650
    %v791 = vpack.c.b16 %v658, %v651
    %v792 = vpack.c.b16 %v659, %v652
    %v793 = vpack.c.b16 %v667, %v660
    %v794 = vpack.c.b16 %v668, %v661
    %v795 = vpack.c.b16 %v669, %v662
    %v796 = vpack.c.b16 %v670, %v663
    %v797 = vpack.c.b16 %v671, %v664
    %v798 = vpack.c.b16 %v672, %v665
    %v799 = vpack.c.b16 %v673, %v666
    %v800 = vpack.c.b16 %v681, %v674
    %v801 = vpack.c.b16 %v682, %v675
    %v802 = vpack.c.b16 %v683, %v676
    %v803 = vpack.c.b16 %v684, %v677
    %v804 = vpack.c.b16 %v685, %v678
    %v805 = vpack.c.b16 %v686, %v679
    %v806 = vpack.c.b16 %v687, %v680
    %v807 = vpack.c.b16 %v695, %v688
    %v808 = vpack.c.b16 %v696, %v689
    %v809 = vpack.c.b16 %v697, %v690
    %v810 = vpack.c.b16 %v698, %v691
    %v811 = vpack.c.b16 %v699, %v692
    %v812 = vpack.c.b16 %v700, %v693
    %v813 = vpack.c.b16 %v701, %v694
    %v1008 = vunpack.c.l.b16 %v245
    %v1009 = vunpack.c.l.b16 %v246
    %v1010 = vunpack.c.l.b16 %v247
    %v1011 = vunpack.c.l.b16 %v248
    %v1012 = vunpack.c.l.b16 %v249
    %v1013 = vunpack.c.l.b16 %v250
    %v1014 = vunpack.c.l.b16 %v251
    %v1015 = vunpack.c.l.b16 %v252
    %v1016 = vunpack.c.l.b16 %v253
    %v1017 = vunpack.c.l.b16 %v254
    %v1018 = vunpack.c.l.b16 %v255
    %v1019 = vunpack.c.l.b16 %v256
    %v1020 = vunpack.c.l.b16 %v257
    %v1021 = vunpack.c.l.b16 %v258
    %v1022 = vunpack.c.l.b16 %v259
    %v1023 = vunpack.c.l.b16 %v260
    %v1024 = vunpack.c.l.b16 %v261
    %v1025 = vunpack.c.l.b16 %v262
    %v1026 = vunpack.c.l.b16 %v263
    %v1027 = vunpack.c.l.b16 %v264
    %v1028 = vunpack.c.l.b16 %v265
    %v1029 = vunpack.c.l.b16 %v266
    %v1030 = vunpack.c.l.b16 %v267
    %v1031 = vunpack.c.l.b16 %v268
    %v1032 = vunpack.c.l.b16 %v269
    %v1033 = vunpack.c.l.b16 %v270
    %v1034 = vunpack.c.l.b16 %v271
    %v1035 = vunpack.c.l.b16 %v272
    %v1036 = vunpack.c.l.b16 %v273
    %v1037 = vunpack.c.l.b16 %v274
    %v1038 = vunpack.c.l.b16 %v275
    %v1039 = vunpack.c.l.b16 %v276
    %v1040 = vunpack.c.l.b16 %v277
    %v1041 = vunpack.c.l.b16 %v278
    %v1042 = vunpack.c.l.b16 %v279
    %v1043 = vunpack.c.l.b16 %v280
    %v1044 = vunpack.c.l.b16 %v281
    %v1045 = vunpack.c.l.b16 %v282
    %v1046 = vunpack.c.l.b16 %v283
    %v1047 = vunpack.c.l.b16 %v284
    %v1048 = vunpack.c.l.b16 %v285
    %v1049 = vunpack.c.l.b16 %v286
    %v1050 = vunpack.c.l.b16 %v287
    %v1051 = vunpack.c.l.b16 %v288
    %v1052 = vunpack.c.l.b16 %v289
    %v1053 = vunpack.c.l.b16 %v290
    %v1054 = vunpack.c.l.b16 %v291
    %v1055 = vunpack.c.l.b16 %v292
    %v1056 = vunpack.c.l.b16 %v293
    %v1057 = vunpack.c.l.b16 %v294
    %v1058 = vunpack.c.l.b16 %v295
    %v1059 = vunpack.c.l.b16 %v296
    %v1060 = vunpack.c.l.b16 %v297
    %v1061 = vunpack.c.l.b16 %v298
    %v1062 = vunpack.c.l.b16 %v299
    %v1063 = vunpack.c.l.b16 %v300
    %v1064 = vunpack.c.l.b16 %v301
    %v1065 = vunpack.c.l.b16 %v302
    %v1066 = vunpack.c.l.b16 %v303
    %v1067 = vunpack.c.l.b16 %v304
    %v1068 = vunpack.c.l.b16 %v305
    %v1069 = vunpack.c.l.b16 %v306
    %v1070 = vunpack.c.l.b16 %v307
    %v1071 = vunpack.c.l.b16 %v308
    %v1072 = vunpack.c.l.b16 %v309
    %v1073 = vunpack.c.l.b16 %v310
    %v1074 = vunpack.c.l.b16 %v311
    %v1075 = vunpack.c.l.b16 %v312
    %v1076 = vunpack.c.l.b16 %v313
    %v1077 = vunpack.c.l.b16 %v314
    %v1078 = vunpack.c.l.b16 %v315
    %v1079 = vunpack.c.l.b16 %v316
    %v1080 = vunpack.c.l.b16 %v317
    %v1081 = vunpack.c.l.b16 %v318
    %v1082 = vunpack.c.l.b16 %v319
    %v1083 = vunpack.c.l.b16 %v320
    %v1084 = vunpack.c.l.b16 %v321
    %v1085 = vunpack.c.l.b16 %v322
    %v1086 = vunpack.c.l.b16 %v323
    %v1087 = vunpack.c.l.b16 %v324
    %v1088 = vunpack.c.l.b16 %v325
    %v1089 = vunpack.c.l.b16 %v326
    %v1090 = vunpack.c.l.b16 %v327
    %v1091 = vunpack.c.l.b16 %v328
    %v1092 = vunpack.c.l.b16 %v329
    %v1093 = vunpack.c.l.b16 %v330
    %v1094 = vunpack.c.l.b16 %v331
    %v1095 = vunpack.c.l.b16 %v332
    %v1096 = vunpack.c.l.b16 %v333
    %v1097 = vunpack.c.l.b16 %v334
    %v1098 = vunpack.c.l.b16 %v335
    %v1099 = vunpack.c.l.b16 %v336
    %v1100 = vunpack.c.l.b16 %v337
    %v1101 = vunpack.c.l.b16 %v338
    %v1102 = vunpack.c.l.b16 %v339
    %v1103 = vunpack.c.l.b16 %v340
    %v1104 = vunpack.c.l.b16 %v341
    %v1105 = vunpack.c.l.b16 %v342
    %v1106 = vpack.c.b16 %v1009, %v1008
    %v1107 = vpack.c.b16 %v1011, %v1010
    %v1108 = vpack.c.b16 %v1013, %v1012
    %v1109 = vpack.c.b16 %v1015, %v1014
    %v1110 = vpack.c.b16 %v1017, %v1016
    %v1111 = vpack.c.b16 %v1019, %v1018
    %v1112 = vpack.c.b16 %v1021, %v1020
    %v1113 = vpack.c.b16 %v1023, %v1022
    %v1114 = vpack.c.b16 %v1025, %v1024
    %v1115 = vpack.c.b16 %v1027, %v1026
    %v1116 = vpack.c.b16 %v1029, %v1028
    %v1117 = vpack.c.b16 %v1031, %v1030
    %v1118 = vpack.c.b16 %v1033, %v1032
    %v1119 = vpack.c.b16 %v1035, %v1034
    %v1120 = vpack.c.b16 %v1037, %v1036
    %v1121 = vpack.c.b16 %v1039, %v1038
    %v1122 = vpack.c.b16 %v1041, %v1040
    %v1123 = vpack.c.b16 %v1043, %v1042
    %v1124 = vpack.c.b16 %v1045, %v1044
    %v1125 = vpack.c.b16 %v1047, %v1046
    %v1126 = vpack.c.b16 %v1049, %v1048
    %v1127 = vpack.c.b16 %v1051, %v1050
    %v1128 = vpack.c.b16 %v1053, %v1052
    %v1129 = vpack.c.b16 %v1055, %v1054
    %v1130 = vpack.c.b16 %v1057, %v1056
    %v1131 = vpack.c.b16 %v1059, %v1058
    %v1132 = vpack.c.b16 %v1061, %v1060
    %v1133 = vpack.c.b16 %v1063, %v1062
    %v1134 = vpack.c.b16 %v1065, %v1064
    %v1135 = vpack.c.b16 %v1067, %v1066
    %v1136 = vpack.c.b16 %v1069, %v1068
    %v1137 = vpack.c.b16 %v1071, %v1070
    %v1138 = vpack.c.b16 %v1073, %v1072
    %v1139 = vpack.c.b16 %v1075, %v1074
    %v1140 = vpack.c.b16 %v1077, %v1076
    %v1141 = vpack.c.b16 %v1079, %v1078
    %v1142 = vpack.c.b16 %v1081, %v1080
    %v1143 = vpack.c.b16 %v1083, %v1082
    %v1144 = vpack.c.b16 %v1085, %v1084
    %v1145 = vpack.c.b16 %v1087, %v1086
    %v1146 = vpack.c.b16 %v1089, %v1088
    %v1147 = vpack.c.b16 %v1091, %v1090
    %v1148 = vpack.c.b16 %v1093, %v1092
    %v1149 = vpack.c.b16 %v1095, %v1094
    %v1150 = vpack.c.b16 %v1097, %v1096
    %v1151 = vpack.c.b16 %v1099, %v1098
    %v1152 = vpack.c.b16 %v1101, %v1100
    %v1153 = vpack.c.b16 %v1103, %v1102
    %v1154 = vpack.c.b16 %v1105, %v1104
    %vm1204 = vcmask 130048
    %v1206 = vsel %vm1204, %v708, 0
    %v1209 = vsel %vm1204, %v715, 0
    %v1212 = vsel %vm1204, %v722, 0
    %v1215 = vsel %vm1204, %v729, 0
    %v1218 = vsel %vm1204, %v736, 0
    %v1221 = vsel %vm1204, %v743, 0
    %v1224 = vsel %vm1204, %v750, 0
    %v1227 = vsel %vm1204, %v757, 0
    %v1230 = vsel %vm1204, %v764, 0
    %v1233 = vsel %vm1204, %v771, 0
    %v1236 = vsel %vm1204, %v778, 0
    %v1239 = vsel %vm1204, %v785, 0
    %v1242 = vsel %vm1204, %v792, 0
    %v1245 = vsel %vm1204, %v799, 0
    %v1248 = vsel %vm1204, %v806, 0
    %v1251 = vsel %vm1204, %v813, 0
    %1253 = vmatprep.subr.bf16.mxu0 0
    %1254 = vmatpush1.bf16.msra.mxu0 %v1106
    %1255 = vmatprep.subr.bf16.mxu0 0
    %1256 = vmatpush1.bf16.msra.mxu0 %v1107
    %1257 = vmatprep.subr.bf16.mxu0 0
    %1258 = vmatpush1.bf16.msra.mxu0 %v1108
    %1259 = vmatprep.subr.bf16.mxu0 0
    %1260 = vmatpush1.bf16.msra.mxu0 %v1109
    %1261 = vmatprep.subr.bf16.mxu0 0
    %1262 = vmatpush1.bf16.msra.mxu0 %v1110
    %1263 = vmatprep.subr.bf16.mxu0 0
    %1264 = vmatpush1.bf16.msra.mxu0 %v1111
    %1265 = vmatprep.subr.bf16.mxu0 0
    %1266 = vmatpush1.bf16.msra.mxu0 %v1112
    %1267 = vmatprep.subr.bf16.mxu0 0
    %1268 = vmatpush1.bf16.msra.mxu0 %v1113
    %1269 = vmatprep.subr.bf16.mxu0 0
    %1270 = vmatpush1.bf16.msra.mxu0 %v1114
    %1271 = vmatprep.subr.bf16.mxu0 0
    %1272 = vmatpush1.bf16.msra.mxu0 %v1115
    %1273 = vmatprep.subr.bf16.mxu0 0
    %1274 = vmatpush1.bf16.msra.mxu0 %v1116
    %1275 = vmatprep.subr.bf16.mxu0 0
    %1276 = vmatpush1.bf16.msra.mxu0 %v1117
    %1277 = vmatprep.subr.bf16.mxu0 0
    %1278 = vmatpush1.bf16.msra.mxu0 %v1118
    %1279 = vmatprep.subr.bf16.mxu0 0
    %1280 = vmatpush1.bf16.msra.mxu0 %v1119
    %1281 = vmatprep.subr.bf16.mxu0 0
    %1282 = vmatpush1.bf16.msra.mxu0 %v1120
    %1283 = vmatprep.subr.bf16.mxu0 0
    %1284 = vmatpush1.bf16.msra.mxu0 %v1121
    %1285 = vmatprep.mubr.bf16.mxu0 %v703
    %1286 = vmatmul.mubr.bf16.gmra.mrb[0].mxu0 %v702
    %v1287 = vpop.f32.mrb[0].mxu0
    %v1288 = vadd.f32 %v348, %v1287
    %v1289 = vpop.f32.mrb[0].mxu0
    %v1290 = vpop.f32.mrb[0].mxu0
    %v1291 = vadd.f32 %v348, %v1290
    %v1292 = vpop.f32.mrb[0].mxu0
    %1293 = vmatprep.mubr.bf16.mxu0 %v710
    %1294 = vmatmul.mubr.bf16.gmra.mrb[0].mxu0 %v709
    %v1295 = vpop.f32.mrb[0].mxu0
    %v1296 = vadd.f32 %v348, %v1295
    %v1297 = vpop.f32.mrb[0].mxu0
    %v1298 = vpop.f32.mrb[0].mxu0
    %v1299 = vadd.f32 %v348, %v1298
    %v1300 = vpop.f32.mrb[0].mxu0
    %1301 = vmatprep.mubr.bf16.mxu0 %v717
    %1302 = vmatmul.mubr.bf16.gmra.mrb[0].mxu0 %v716
    %v1303 = vpop.f32.mrb[0].mxu0
    %v1304 = vadd.f32 %v348, %v1303
    %v1305 = vpop.f32.mrb[0].mxu0
    %v1306 = vpop.f32.mrb[0].mxu0
    %v1307 = vadd.f32 %v348, %v1306
    %v1308 = vpop.f32.mrb[0].mxu0
    %1309 = vmatprep.mubr.bf16.mxu0 %v724
    %1310 = vmatmul.mubr.bf16.gmra.mrb[0].mxu0 %v723
    %v1311 = vpop.f32.mrb[0].mxu0
    %v1312 = vadd.f32 %v348, %v1311
    %v1313 = vpop.f32.mrb[0].mxu0
    %v1314 = vpop.f32.mrb[0].mxu0
    %v1315 = vadd.f32 %v348, %v1314
    %v1316 = vpop.f32.mrb[0].mxu0
    %1317 = vmatprep.mubr.bf16.mxu0 %v731
    %1318 = vmatmul.mubr.bf16.gmra.mrb[0].mxu0 %v730
    %v1319 = vpop.f32.mrb[0].mxu0
    %v1320 = vadd.f32 %v348, %v1319
    %v1321 = vpop.f32.mrb[0].mxu0
    %v1322 = vpop.f32.mrb[0].mxu0
    %v1323 = vadd.f32 %v348, %v1322
    %v1324 = vpop.f32.mrb[0].mxu0
    %1325 = vmatprep.mubr.bf16.mxu0 %v738
    %1326 = vmatmul.mubr.bf16.gmra.mrb[0].mxu0 %v737
    %v1327 = vpop.f32.mrb[0].mxu0
    %v1328 = vadd.f32 %v348, %v1327
    %v1329 = vpop.f32.mrb[0].mxu0
    %v1330 = vpop.f32.mrb[0].mxu0
    %v1331 = vadd.f32 %v348, %v1330
    %v1332 = vpop.f32.mrb[0].mxu0
    %1333 = vmatprep.mubr.bf16.mxu0 %v745
    %1334 = vmatmul.mubr.bf16.gmra.mrb[0].mxu0 %v744
    %v1335 = vpop.f32.mrb[0].mxu0
    %v1336 = vadd.f32 %v348, %v1335
    %v1337 = vpop.f32.mrb[0].mxu0
    %v1338 = vpop.f32.mrb[0].mxu0
    %v1339 = vadd.f32 %v348, %v1338
    %v1340 = vpop.f32.mrb[0].mxu0
    %1341 = vmatprep.mubr.bf16.mxu0 %v752
    %1342 = vmatmul.mubr.bf16.gmra.mrb[0].mxu0 %v751
    %v1343 = vpop.f32.mrb[0].mxu0
    %v1344 = vadd.f32 %v348, %v1343
    %v1345 = vpop.f32.mrb[0].mxu0
    %v1346 = vpop.f32.mrb[0].mxu0
    %v1347 = vadd.f32 %v348, %v1346
    %v1348 = vpop.f32.mrb[0].mxu0
    %1349 = vmatprep.mubr.bf16.mxu0 %v759
    %1350 = vmatmul.mubr.bf16.gmra.mrb[0].mxu0 %v758
    %v1351 = vpop.f32.mrb[0].mxu0
    %v1352 = vadd.f32 %v348, %v1351
    %v1353 = vpop.f32.mrb[0].mxu0
    %v1354 = vpop.f32.mrb[0].mxu0
    %v1355 = vadd.f32 %v348, %v1354
    %v1356 = vpop.f32.mrb[0].mxu0
    %1357 = vmatprep.mubr.bf16.mxu0 %v766
    %1358 = vmatmul.mubr.bf16.gmra.mrb[0].mxu0 %v765
    %v1359 = vpop.f32.mrb[0].mxu0
    %v1360 = vadd.f32 %v348, %v1359
    %v1361 = vpop.f32.mrb[0].mxu0
    %v1362 = vpop.f32.mrb[0].mxu0
    %v1363 = vadd.f32 %v348, %v1362
    %v1364 = vpop.f32.mrb[0].mxu0
    %1365 = vmatprep.mubr.bf16.mxu0 %v773
    %1366 = vmatmul.mubr.bf16.gmra.mrb[0].mxu0 %v772
    %v1367 = vpop.f32.mrb[0].mxu0
    %v1368 = vadd.f32 %v348, %v1367
    %v1369 = vpop.f32.mrb[0].mxu0
    %v1370 = vpop.f32.mrb[0].mxu0
    %v1371 = vadd.f32 %v348, %v1370
    %v1372 = vpop.f32.mrb[0].mxu0
    %1373 = vmatprep.mubr.bf16.mxu0 %v780
    %1374 = vmatmul.mubr.bf16.gmra.mrb[0].mxu0 %v779
    %v1375 = vpop.f32.mrb[0].mxu0
    %v1376 = vadd.f32 %v348, %v1375
    %v1377 = vpop.f32.mrb[0].mxu0
    %v1378 = vpop.f32.mrb[0].mxu0
    %v1379 = vadd.f32 %v348, %v1378
    %v1380 = vpop.f32.mrb[0].mxu0
    %1381 = vmatprep.mubr.bf16.mxu0 %v787
    %1382 = vmatmul.mubr.bf16.gmra.mrb[0].mxu0 %v786
    %v1383 = vpop.f32.mrb[0].mxu0
    %v1384 = vadd.f32 %v348, %v1383
    %v1385 = vpop.f32.mrb[0].mxu0
    %v1386 = vpop.f32.mrb[0].mxu0
    %v1387 = vadd.f32 %v348, %v1386
    %v1388 = vpop.f32.mrb[0].mxu0
    %1389 = vmatprep.mubr.bf16.mxu0 %v794
    %1390 = vmatmul.mubr.bf16.gmra.mrb[0].mxu0 %v793
    %v1391 = vpop.f32.mrb[0].mxu0
    %v1392 = vadd.f32 %v348, %v1391
    %v1393 = vpop.f32.mrb[0].mxu0
    %v1394 = vpop.f32.mrb[0].mxu0
    %v1395 = vadd.f32 %v348, %v1394
    %v1396 = vpop.f32.mrb[0].mxu0
    %1397 = vmatprep.mubr.bf16.mxu0 %v801
    %1398 = vmatmul.mubr.bf16.gmra.mrb[0].mxu0 %v800
    %v1399 = vpop.f32.mrb[0].mxu0
    %v1400 = vadd.f32 %v348, %v1399
    %v1401 = vpop.f32.mrb[0].mxu0
    %v1402 = vpop.f32.mrb[0].mxu0
    %v1403 = vadd.f32 %v348, %v1402
    %v1404 = vpop.f32.mrb[0].mxu0
    %1405 = vmatprep.mubr.bf16.mxu0 %v808
    %1406 = vmatmul.mubr.bf16.gmra.mrb[0].mxu0 %v807
    %v1407 = vpop.f32.mrb[0].mxu0
    %v1408 = vadd.f32 %v348, %v1407
    %v1409 = vpop.f32.mrb[0].mxu0
    %v1410 = vpop.f32.mrb[0].mxu0
    %v1411 = vadd.f32 %v348, %v1410
    %v1412 = vpop.f32.mrb[0].mxu0
    %1413 = vdwg.mxu0
    %1414 = vmatprep.subr.bf16.mxu0 0
    %1415 = vmatpush1.bf16.msra.mxu0 %v1122
    %1416 = vmatprep.subr.bf16.mxu0 0
    %1417 = vmatpush1.bf16.msra.mxu0 %v1123
    %1418 = vmatprep.subr.bf16.mxu0 0
    %1419 = vmatpush1.bf16.msra.mxu0 %v1124
    %1420 = vmatprep.subr.bf16.mxu0 0
    %1421 = vmatpush1.bf16.msra.mxu0 %v1125
    %1422 = vmatprep.subr.bf16.mxu0 0
    %1423 = vmatpush1.bf16.msra.mxu0 %v1126
    %1424 = vmatprep.subr.bf16.mxu0 0
    %1425 = vmatpush1.bf16.msra.mxu0 %v1127
    %1426 = vmatprep.subr.bf16.mxu0 0
    %1427 = vmatpush1.bf16.msra.mxu0 %v1128
    %1428 = vmatprep.subr.bf16.mxu0 0
    %1429 = vmatpush1.bf16.msra.mxu0 %v1129
    %1430 = vmatprep.subr.bf16.mxu0 0
    %1431 = vmatpush1.bf16.msra.mxu0 %v1130
    %1432 = vmatprep.subr.bf16.mxu0 0
    %1433 = vmatpush1.bf16.msra.mxu0 %v1131
    %1434 = vmatprep.subr.bf16.mxu0 0
    %1435 = vmatpush1.bf16.msra.mxu0 %v1132
    %1436 = vmatprep.subr.bf16.mxu0 0
    %1437 = vmatpush1.bf16.msra.mxu0 %v1133
    %1438 = vmatprep.subr.bf16.mxu0 0
    %1439 = vmatpush1.bf16.msra.mxu0 %v1134
    %1440 = vmatprep.subr.bf16.mxu0 0
    %1441 = vmatpush1.bf16.msra.mxu0 %v1135
    %1442 = vmatprep.subr.bf16.mxu0 0
    %1443 = vmatpush1.bf16.msra.mxu0 %v1136
    %1444 = vmatprep.subr.bf16.mxu0 0
    %1445 = vmatpush1.bf16.msra.mxu0 %v1137
    %1446 = vmatprep.mubr.bf16.mxu0 %v705
    %1447 = vmatmul.mubr.bf16.gmra.mrb[0].mxu0 %v704
    %v1448 = vpop.f32.mrb[0].mxu0
    %v1449 = vadd.f32 %v1288, %v1448
    %v1450 = vpop.f32.mrb[0].mxu0
    %v1451 = vpop.f32.mrb[0].mxu0
    %v1452 = vadd.f32 %v1291, %v1451
    %v1453 = vpop.f32.mrb[0].mxu0
    %1454 = vmatprep.mubr.bf16.mxu0 %v712
    %1455 = vmatmul.mubr.bf16.gmra.mrb[0].mxu0 %v711
    %v1456 = vpop.f32.mrb[0].mxu0
    %v1457 = vadd.f32 %v1296, %v1456
    %v1458 = vpop.f32.mrb[0].mxu0
    %v1459 = vpop.f32.mrb[0].mxu0
    %v1460 = vadd.f32 %v1299, %v1459
    %v1461 = vpop.f32.mrb[0].mxu0
    %1462 = vmatprep.mubr.bf16.mxu0 %v719
    %1463 = vmatmul.mubr.bf16.gmra.mrb[0].mxu0 %v718
    %v1464 = vpop.f32.mrb[0].mxu0
    %v1465 = vadd.f32 %v1304, %v1464
    %v1466 = vpop.f32.mrb[0].mxu0
    %v1467 = vpop.f32.mrb[0].mxu0
    %v1468 = vadd.f32 %v1307, %v1467
    %v1469 = vpop.f32.mrb[0].mxu0
    %1470 = vmatprep.mubr.bf16.mxu0 %v726
    %1471 = vmatmul.mubr.bf16.gmra.mrb[0].mxu0 %v725
    %v1472 = vpop.f32.mrb[0].mxu0
    %v1473 = vadd.f32 %v1312, %v1472
    %v1474 = vpop.f32.mrb[0].mxu0
    %v1475 = vpop.f32.mrb[0].mxu0
    %v1476 = vadd.f32 %v1315, %v1475
    %v1477 = vpop.f32.mrb[0].mxu0
    %1478 = vmatprep.mubr.bf16.mxu0 %v733
    %1479 = vmatmul.mubr.bf16.gmra.mrb[0].mxu0 %v732
    %v1480 = vpop.f32.mrb[0].mxu0
    %v1481 = vadd.f32 %v1320, %v1480
    %v1482 = vpop.f32.mrb[0].mxu0
    %v1483 = vpop.f32.mrb[0].mxu0
    %v1484 = vadd.f32 %v1323, %v1483
    %v1485 = vpop.f32.mrb[0].mxu0
    %1486 = vmatprep.mubr.bf16.mxu0 %v740
    %1487 = vmatmul.mubr.bf16.gmra.mrb[0].mxu0 %v739
    %v1488 = vpop.f32.mrb[0].mxu0
    %v1489 = vadd.f32 %v1328, %v1488
    %v1490 = vpop.f32.mrb[0].mxu0
    %v1491 = vpop.f32.mrb[0].mxu0
    %v1492 = vadd.f32 %v1331, %v1491
    %v1493 = vpop.f32.mrb[0].mxu0
    %1494 = vmatprep.mubr.bf16.mxu0 %v747
    %1495 = vmatmul.mubr.bf16.gmra.mrb[0].mxu0 %v746
    %v1496 = vpop.f32.mrb[0].mxu0
    %v1497 = vadd.f32 %v1336, %v1496
    %v1498 = vpop.f32.mrb[0].mxu0
    %v1499 = vpop.f32.mrb[0].mxu0
    %v1500 = vadd.f32 %v1339, %v1499
    %v1501 = vpop.f32.mrb[0].mxu0
    %1502 = vmatprep.mubr.bf16.mxu0 %v754
    %1503 = vmatmul.mubr.bf16.gmra.mrb[0].mxu0 %v753
    %v1504 = vpop.f32.mrb[0].mxu0
    %v1505 = vadd.f32 %v1344, %v1504
    %v1506 = vpop.f32.mrb[0].mxu0
    %v1507 = vpop.f32.mrb[0].mxu0
    %v1508 = vadd.f32 %v1347, %v1507
    %v1509 = vpop.f32.mrb[0].mxu0
    %1510 = vmatprep.mubr.bf16.mxu0 %v761
    %1511 = vmatmul.mubr.bf16.gmra.mrb[0].mxu0 %v760
    %v1512 = vpop.f32.mrb[0].mxu0
    %v1513 = vadd.f32 %v1352, %v1512
    %v1514 = vpop.f32.mrb[0].mxu0
    %v1515 = vpop.f32.mrb[0].mxu0
    %v1516 = vadd.f32 %v1355, %v1515
    %v1517 = vpop.f32.mrb[0].mxu0
    %1518 = vmatprep.mubr.bf16.mxu0 %v768
    %1519 = vmatmul.mubr.bf16.gmra.mrb[0].mxu0 %v767
    %v1520 = vpop.f32.mrb[0].mxu0
    %v1521 = vadd.f32 %v1360, %v1520
    %v1522 = vpop.f32.mrb[0].mxu0
    %v1523 = vpop.f32.mrb[0].mxu0
    %v1524 = vadd.f32 %v1363, %v1523
    %v1525 = vpop.f32.mrb[0].mxu0
    %1526 = vmatprep.mubr.bf16.mxu0 %v775
    %1527 = vmatmul.mubr.bf16.gmra.mrb[0].mxu0 %v774
    %v1528 = vpop.f32.mrb[0].mxu0
    %v1529 = vadd.f32 %v1368, %v1528
    %v1530 = vpop.f32.mrb[0].mxu0
    %v1531 = vpop.f32.mrb[0].mxu0
    %v1532 = vadd.f32 %v1371, %v1531
    %v1533 = vpop.f32.mrb[0].mxu0
    %1534 = vmatprep.mubr.bf16.mxu0 %v782
    %1535 = vmatmul.mubr.bf16.gmra.mrb[0].mxu0 %v781
    %v1536 = vpop.f32.mrb[0].mxu0
    %v1537 = vadd.f32 %v1376, %v1536
    %v1538 = vpop.f32.mrb[0].mxu0
    %v1539 = vpop.f32.mrb[0].mxu0
    %v1540 = vadd.f32 %v1379, %v1539
    %v1541 = vpop.f32.mrb[0].mxu0
    %1542 = vmatprep.mubr.bf16.mxu0 %v789
    %1543 = vmatmul.mubr.bf16.gmra.mrb[0].mxu0 %v788
    %v1544 = vpop.f32.mrb[0].mxu0
    %v1545 = vadd.f32 %v1384, %v1544
    %v1546 = vpop.f32.mrb[0].mxu0
    %v1547 = vpop.f32.mrb[0].mxu0
    %v1548 = vadd.f32 %v1387, %v1547
    %v1549 = vpop.f32.mrb[0].mxu0
    %1550 = vmatprep.mubr.bf16.mxu0 %v796
    %1551 = vmatmul.mubr.bf16.gmra.mrb[0].mxu0 %v795
    %v1552 = vpop.f32.mrb[0].mxu0
    %v1553 = vadd.f32 %v1392, %v1552
    %v1554 = vpop.f32.mrb[0].mxu0
    %v1555 = vpop.f32.mrb[0].mxu0
    %v1556 = vadd.f32 %v1395, %v1555
    %v1557 = vpop.f32.mrb[0].mxu0
    %1558 = vmatprep.mubr.bf16.mxu0 %v803
    %1559 = vmatmul.mubr.bf16.gmra.mrb[0].mxu0 %v802
    %v1560 = vpop.f32.mrb[0].mxu0
    %v1561 = vadd.f32 %v1400, %v1560
    %v1562 = vpop.f32.mrb[0].mxu0
    %v1563 = vpop.f32.mrb[0].mxu0
    %v1564 = vadd.f32 %v1403, %v1563
    %v1565 = vpop.f32.mrb[0].mxu0
    %1566 = vmatprep.mubr.bf16.mxu0 %v810
    %1567 = vmatmul.mubr.bf16.gmra.mrb[0].mxu0 %v809
    %v1568 = vpop.f32.mrb[0].mxu0
    %v1569 = vadd.f32 %v1408, %v1568
    %v1570 = vpop.f32.mrb[0].mxu0
    %v1571 = vpop.f32.mrb[0].mxu0
    %v1572 = vadd.f32 %v1411, %v1571
    %v1573 = vpop.f32.mrb[0].mxu0
    %1574 = vdwg.mxu0
    %1575 = vmatprep.subr.bf16.mxu0 0
    %1576 = vmatpush1.bf16.msra.mxu0 %v1138
    %1577 = vmatprep.subr.bf16.mxu0 0
    %1578 = vmatpush1.bf16.msra.mxu0 %v1139
    %1579 = vmatprep.subr.bf16.mxu0 0
    %1580 = vmatpush1.bf16.msra.mxu0 %v1140
    %1581 = vmatprep.subr.bf16.mxu0 0
    %1582 = vmatpush1.bf16.msra.mxu0 %v1141
    %1583 = vmatprep.subr.bf16.mxu0 0
    %1584 = vmatpush1.bf16.msra.mxu0 %v1142
    %1585 = vmatprep.subr.bf16.mxu0 0
    %1586 = vmatpush1.bf16.msra.mxu0 %v1143
    %1587 = vmatprep.subr.bf16.mxu0 0
    %1588 = vmatpush1.bf16.msra.mxu0 %v1144
    %1589 = vmatprep.subr.bf16.mxu0 0
    %1590 = vmatpush1.bf16.msra.mxu0 %v1145
    %1591 = vmatprep.subr.bf16.mxu0 0
    %1592 = vmatpush1.bf16.msra.mxu0 %v1146
    %1593 = vmatprep.subr.bf16.mxu0 0
    %1594 = vmatpush1.bf16.msra.mxu0 %v1147
    %1595 = vmatprep.subr.bf16.mxu0 0
    %1596 = vmatpush1.bf16.msra.mxu0 %v1148
    %1597 = vmatprep.subr.bf16.mxu0 0
    %1598 = vmatpush1.bf16.msra.mxu0 %v1149
    %1599 = vmatprep.subr.bf16.mxu0 0
    %1600 = vmatpush1.bf16.msra.mxu0 %v1150
    %1601 = vmatprep.subr.bf16.mxu0 0
    %1602 = vmatpush1.bf16.msra.mxu0 %v1151
    %1603 = vmatprep.subr.bf16.mxu0 0
    %1604 = vmatpush1.bf16.msra.mxu0 %v1152
    %1605 = vmatprep.subr.bf16.mxu0 0
    %1606 = vmatpush1.bf16.msra.mxu0 %v1153
    %1607 = vmatprep.mubr.bf16.mxu0 %v707
    %1608 = vmatmul.mubr.bf16.gmra.mrb[0].mxu0 %v706
    %v1609 = vpop.f32.mrb[0].mxu0
    %v1610 = vadd.f32 %v1449, %v1609
    %v1611 = vpop.f32.mrb[0].mxu0
    %v1612 = vpop.f32.mrb[0].mxu0
    %v1613 = vadd.f32 %v1452, %v1612
    %v1614 = vpop.f32.mrb[0].mxu0
    %1615 = vmatprep.mubr.bf16.mxu0 %v714
    %1616 = vmatmul.mubr.bf16.gmra.mrb[0].mxu0 %v713
    %v1617 = vpop.f32.mrb[0].mxu0
    %v1618 = vadd.f32 %v1457, %v1617
    %v1619 = vpop.f32.mrb[0].mxu0
    %v1620 = vpop.f32.mrb[0].mxu0
    %v1621 = vadd.f32 %v1460, %v1620
    %v1622 = vpop.f32.mrb[0].mxu0
    %1623 = vmatprep.mubr.bf16.mxu0 %v721
    %1624 = vmatmul.mubr.bf16.gmra.mrb[0].mxu0 %v720
    %v1625 = vpop.f32.mrb[0].mxu0
    %v1626 = vadd.f32 %v1465, %v1625
    %v1627 = vpop.f32.mrb[0].mxu0
    %v1628 = vpop.f32.mrb[0].mxu0
    %v1629 = vadd.f32 %v1468, %v1628
    %v1630 = vpop.f32.mrb[0].mxu0
    %1631 = vmatprep.mubr.bf16.mxu0 %v728
    %1632 = vmatmul.mubr.bf16.gmra.mrb[0].mxu0 %v727
    %v1633 = vpop.f32.mrb[0].mxu0
    %v1634 = vadd.f32 %v1473, %v1633
    %v1635 = vpop.f32.mrb[0].mxu0
    %v1636 = vpop.f32.mrb[0].mxu0
    %v1637 = vadd.f32 %v1476, %v1636
    %v1638 = vpop.f32.mrb[0].mxu0
    %1639 = vmatprep.mubr.bf16.mxu0 %v735
    %1640 = vmatmul.mubr.bf16.gmra.mrb[0].mxu0 %v734
    %v1641 = vpop.f32.mrb[0].mxu0
    %v1642 = vadd.f32 %v1481, %v1641
    %v1643 = vpop.f32.mrb[0].mxu0
    %v1644 = vpop.f32.mrb[0].mxu0
    %v1645 = vadd.f32 %v1484, %v1644
    %v1646 = vpop.f32.mrb[0].mxu0
    %1647 = vmatprep.mubr.bf16.mxu0 %v742
    %1648 = vmatmul.mubr.bf16.gmra.mrb[0].mxu0 %v741
    %v1649 = vpop.f32.mrb[0].mxu0
    %v1650 = vadd.f32 %v1489, %v1649
    %v1651 = vpop.f32.mrb[0].mxu0
    %v1652 = vpop.f32.mrb[0].mxu0
    %v1653 = vadd.f32 %v1492, %v1652
    %v1654 = vpop.f32.mrb[0].mxu0
    %1655 = vmatprep.mubr.bf16.mxu0 %v749
    %1656 = vmatmul.mubr.bf16.gmra.mrb[0].mxu0 %v748
    %v1657 = vpop.f32.mrb[0].mxu0
    %v1658 = vadd.f32 %v1497, %v1657
    %v1659 = vpop.f32.mrb[0].mxu0
    %v1660 = vpop.f32.mrb[0].mxu0
    %v1661 = vadd.f32 %v1500, %v1660
    %v1662 = vpop.f32.mrb[0].mxu0
    %1663 = vmatprep.mubr.bf16.mxu0 %v756
    %1664 = vmatmul.mubr.bf16.gmra.mrb[0].mxu0 %v755
    %v1665 = vpop.f32.mrb[0].mxu0
    %v1666 = vadd.f32 %v1505, %v1665
    %v1667 = vpop.f32.mrb[0].mxu0
    %v1668 = vpop.f32.mrb[0].mxu0
    %v1669 = vadd.f32 %v1508, %v1668
    %v1670 = vpop.f32.mrb[0].mxu0
    %1671 = vmatprep.mubr.bf16.mxu0 %v763
    %1672 = vmatmul.mubr.bf16.gmra.mrb[0].mxu0 %v762
    %v1673 = vpop.f32.mrb[0].mxu0
    %v1674 = vadd.f32 %v1513, %v1673
    %v1675 = vpop.f32.mrb[0].mxu0
    %v1676 = vpop.f32.mrb[0].mxu0
    %v1677 = vadd.f32 %v1516, %v1676
    %v1678 = vpop.f32.mrb[0].mxu0
    %1679 = vmatprep.mubr.bf16.mxu0 %v770
    %1680 = vmatmul.mubr.bf16.gmra.mrb[0].mxu0 %v769
    %v1681 = vpop.f32.mrb[0].mxu0
    %v1682 = vadd.f32 %v1521, %v1681
    %v1683 = vpop.f32.mrb[0].mxu0
    %v1684 = vpop.f32.mrb[0].mxu0
    %v1685 = vadd.f32 %v1524, %v1684
    %v1686 = vpop.f32.mrb[0].mxu0
    %1687 = vmatprep.mubr.bf16.mxu0 %v777
    %1688 = vmatmul.mubr.bf16.gmra.mrb[0].mxu0 %v776
    %v1689 = vpop.f32.mrb[0].mxu0
    %v1690 = vadd.f32 %v1529, %v1689
    %v1691 = vpop.f32.mrb[0].mxu0
    %v1692 = vpop.f32.mrb[0].mxu0
    %v1693 = vadd.f32 %v1532, %v1692
    %v1694 = vpop.f32.mrb[0].mxu0
    %1695 = vmatprep.mubr.bf16.mxu0 %v784
    %1696 = vmatmul.mubr.bf16.gmra.mrb[0].mxu0 %v783
    %v1697 = vpop.f32.mrb[0].mxu0
    %v1698 = vadd.f32 %v1537, %v1697
    %v1699 = vpop.f32.mrb[0].mxu0
    %v1700 = vpop.f32.mrb[0].mxu0
    %v1701 = vadd.f32 %v1540, %v1700
    %v1702 = vpop.f32.mrb[0].mxu0
    %1703 = vmatprep.mubr.bf16.mxu0 %v791
    %1704 = vmatmul.mubr.bf16.gmra.mrb[0].mxu0 %v790
    %v1705 = vpop.f32.mrb[0].mxu0
    %v1706 = vadd.f32 %v1545, %v1705
    %v1707 = vpop.f32.mrb[0].mxu0
    %v1708 = vpop.f32.mrb[0].mxu0
    %v1709 = vadd.f32 %v1548, %v1708
    %v1710 = vpop.f32.mrb[0].mxu0
    %1711 = vmatprep.mubr.bf16.mxu0 %v798
    %1712 = vmatmul.mubr.bf16.gmra.mrb[0].mxu0 %v797
    %v1713 = vpop.f32.mrb[0].mxu0
    %v1714 = vadd.f32 %v1553, %v1713
    %v1715 = vpop.f32.mrb[0].mxu0
    %v1716 = vpop.f32.mrb[0].mxu0
    %v1717 = vadd.f32 %v1556, %v1716
    %v1718 = vpop.f32.mrb[0].mxu0
    %1719 = vmatprep.mubr.bf16.mxu0 %v805
    %1720 = vmatmul.mubr.bf16.gmra.mrb[0].mxu0 %v804
    %v1721 = vpop.f32.mrb[0].mxu0
    %v1722 = vadd.f32 %v1561, %v1721
    %v1723 = vpop.f32.mrb[0].mxu0
    %v1724 = vpop.f32.mrb[0].mxu0
    %v1725 = vadd.f32 %v1564, %v1724
    %v1726 = vpop.f32.mrb[0].mxu0
    %1727 = vmatprep.mubr.bf16.mxu0 %v812
    %1728 = vmatmul.mubr.bf16.gmra.mrb[0].mxu0 %v811
    %v1729 = vpop.f32.mrb[0].mxu0
    %v1730 = vadd.f32 %v1569, %v1729
    %v1731 = vpop.f32.mrb[0].mxu0
    %v1732 = vpop.f32.mrb[0].mxu0
    %v1733 = vadd.f32 %v1572, %v1732
    %v1734 = vpop.f32.mrb[0].mxu0
    %1735 = vdwg.mxu0
    %1736 = vmatprep.subr.bf16.mxu0 0
    %1737 = vmatpush1.bf16.msra.mxu0 %v1154
    %1738 = vmatprep.subr.bf16.mxu0 0
    %1739 = vmatpush1.bf16.msra.mxu0 0
    %1740 = vmatprep.subr.bf16.mxu0 0
    %1741 = vmatpush1.bf16.msra.mxu0 0
    %1742 = vmatprep.subr.bf16.mxu0 0
    %1743 = vmatpush1.bf16.msra.mxu0 0
    %1744 = vmatprep.subr.bf16.mxu0 0
    %1745 = vmatpush1.bf16.msra.mxu0 0
    %1746 = vmatprep.subr.bf16.mxu0 0
    %1747 = vmatpush1.bf16.msra.mxu0 0
    %1748 = vmatprep.subr.bf16.mxu0 0
    %1749 = vmatpush1.bf16.msra.mxu0 0
    %1750 = vmatprep.subr.bf16.mxu0 0
    %1751 = vmatpush1.bf16.msra.mxu0 0
    %1752 = vmatprep.subr.bf16.mxu0 0
    %1753 = vmatpush1.bf16.msra.mxu0 0
    %1754 = vmatprep.subr.bf16.mxu0 0
    %1755 = vmatpush1.bf16.msra.mxu0 0
    %1756 = vmatprep.subr.bf16.mxu0 0
    %1757 = vmatpush1.bf16.msra.mxu0 0
    %1758 = vmatprep.subr.bf16.mxu0 0
    %1759 = vmatpush1.bf16.msra.mxu0 0
    %1760 = vmatprep.subr.bf16.mxu0 0
    %1761 = vmatpush1.bf16.msra.mxu0 0
    %1762 = vmatprep.subr.bf16.mxu0 0
    %1763 = vmatpush1.bf16.msra.mxu0 0
    %1764 = vmatprep.subr.bf16.mxu0 0
    %1765 = vmatpush1.bf16.msra.mxu0 0
    %1766 = vmatprep.subr.bf16.mxu0 0
    %1767 = vmatpush1.bf16.msra.mxu0 0
    %1768 = vmatprep.mubr.bf16.mxu0 0
    %1769 = vmatmul.mubr.bf16.gmra.mrb[0].mxu0 %v1206
    %v1770 = vpop.f32.mrb[0].mxu0
    %v1771 = vadd.f32 %v1610, %v1770
    %v1772 = vpop.f32.mrb[0].mxu0
    %v1773 = vpop.f32.mrb[0].mxu0
    %v1774 = vadd.f32 %v1613, %v1773
    %v1775 = vpop.f32.mrb[0].mxu0
    %1776 = vmatprep.mubr.bf16.mxu0 0
    %1777 = vmatmul.mubr.bf16.gmra.mrb[0].mxu0 %v1209
    %v1778 = vpop.f32.mrb[0].mxu0
    %v1779 = vadd.f32 %v1618, %v1778
    %v1780 = vpop.f32.mrb[0].mxu0
    %v1781 = vpop.f32.mrb[0].mxu0
    %v1782 = vadd.f32 %v1621, %v1781
    %v1783 = vpop.f32.mrb[0].mxu0
    %1784 = vmatprep.mubr.bf16.mxu0 0
    %1785 = vmatmul.mubr.bf16.gmra.mrb[0].mxu0 %v1212
    %v1786 = vpop.f32.mrb[0].mxu0
    %v1787 = vadd.f32 %v1626, %v1786
    %v1788 = vpop.f32.mrb[0].mxu0
    %v1789 = vpop.f32.mrb[0].mxu0
    %v1790 = vadd.f32 %v1629, %v1789
    %v1791 = vpop.f32.mrb[0].mxu0
    %1792 = vmatprep.mubr.bf16.mxu0 0
    %1793 = vmatmul.mubr.bf16.gmra.mrb[0].mxu0 %v1215
    %v1794 = vpop.f32.mrb[0].mxu0
    %v1795 = vadd.f32 %v1634, %v1794
    %v1796 = vpop.f32.mrb[0].mxu0
    %v1797 = vpop.f32.mrb[0].mxu0
    %v1798 = vadd.f32 %v1637, %v1797
    %v1799 = vpop.f32.mrb[0].mxu0
    %1800 = vmatprep.mubr.bf16.mxu0 0
    %1801 = vmatmul.mubr.bf16.gmra.mrb[0].mxu0 %v1218
    %v1802 = vpop.f32.mrb[0].mxu0
    %v1803 = vadd.f32 %v1642, %v1802
    %v1804 = vpop.f32.mrb[0].mxu0
    %v1805 = vpop.f32.mrb[0].mxu0
    %v1806 = vadd.f32 %v1645, %v1805
    %v1807 = vpop.f32.mrb[0].mxu0
    %1808 = vmatprep.mubr.bf16.mxu0 0
    %1809 = vmatmul.mubr.bf16.gmra.mrb[0].mxu0 %v1221
    %v1810 = vpop.f32.mrb[0].mxu0
    %v1811 = vadd.f32 %v1650, %v1810
    %v1812 = vpop.f32.mrb[0].mxu0
    %v1813 = vpop.f32.mrb[0].mxu0
    %v1814 = vadd.f32 %v1653, %v1813
    %v1815 = vpop.f32.mrb[0].mxu0
    %1816 = vmatprep.mubr.bf16.mxu0 0
    %1817 = vmatmul.mubr.bf16.gmra.mrb[0].mxu0 %v1224
    %v1818 = vpop.f32.mrb[0].mxu0
    %v1819 = vadd.f32 %v1658, %v1818
    %v1820 = vpop.f32.mrb[0].mxu0
    %v1821 = vpop.f32.mrb[0].mxu0
    %v1822 = vadd.f32 %v1661, %v1821
    %v1823 = vpop.f32.mrb[0].mxu0
    %1824 = vmatprep.mubr.bf16.mxu0 0
    %1825 = vmatmul.mubr.bf16.gmra.mrb[0].mxu0 %v1227
    %v1826 = vpop.f32.mrb[0].mxu0
    %v1827 = vadd.f32 %v1666, %v1826
    %v1828 = vpop.f32.mrb[0].mxu0
    %v1829 = vpop.f32.mrb[0].mxu0
    %v1830 = vadd.f32 %v1669, %v1829
    %v1831 = vpop.f32.mrb[0].mxu0
    %1832 = vmatprep.mubr.bf16.mxu0 0
    %1833 = vmatmul.mubr.bf16.gmra.mrb[0].mxu0 %v1230
    %v1834 = vpop.f32.mrb[0].mxu0
    %v1835 = vadd.f32 %v1674, %v1834
    %v1836 = vpop.f32.mrb[0].mxu0
    %v1837 = vpop.f32.mrb[0].mxu0
    %v1838 = vadd.f32 %v1677, %v1837
    %v1839 = vpop.f32.mrb[0].mxu0
    %1840 = vmatprep.mubr.bf16.mxu0 0
    %1841 = vmatmul.mubr.bf16.gmra.mrb[0].mxu0 %v1233
    %v1842 = vpop.f32.mrb[0].mxu0
    %v1843 = vadd.f32 %v1682, %v1842
    %v1844 = vpop.f32.mrb[0].mxu0
    %v1845 = vpop.f32.mrb[0].mxu0
    %v1846 = vadd.f32 %v1685, %v1845
    %v1847 = vpop.f32.mrb[0].mxu0
    %1848 = vmatprep.mubr.bf16.mxu0 0
    %1849 = vmatmul.mubr.bf16.gmra.mrb[0].mxu0 %v1236
    %v1850 = vpop.f32.mrb[0].mxu0
    %v1851 = vadd.f32 %v1690, %v1850
    %v1852 = vpop.f32.mrb[0].mxu0
    %v1853 = vpop.f32.mrb[0].mxu0
    %v1854 = vadd.f32 %v1693, %v1853
    %v1855 = vpop.f32.mrb[0].mxu0
    %1856 = vmatprep.mubr.bf16.mxu0 0
    %1857 = vmatmul.mubr.bf16.gmra.mrb[0].mxu0 %v1239
    %v1858 = vpop.f32.mrb[0].mxu0
    %v1859 = vadd.f32 %v1698, %v1858
    %v1860 = vpop.f32.mrb[0].mxu0
    %v1861 = vpop.f32.mrb[0].mxu0
    %v1862 = vadd.f32 %v1701, %v1861
    %v1863 = vpop.f32.mrb[0].mxu0
    %1864 = vmatprep.mubr.bf16.mxu0 0
    %1865 = vmatmul.mubr.bf16.gmra.mrb[0].mxu0 %v1242
    %v1866 = vpop.f32.mrb[0].mxu0
    %v1867 = vadd.f32 %v1706, %v1866
    %v1868 = vpop.f32.mrb[0].mxu0
    %v1869 = vpop.f32.mrb[0].mxu0
    %v1870 = vadd.f32 %v1709, %v1869
    %v1871 = vpop.f32.mrb[0].mxu0
    %1872 = vmatprep.mubr.bf16.mxu0 0
    %1873 = vmatmul.mubr.bf16.gmra.mrb[0].mxu0 %v1245
    %v1874 = vpop.f32.mrb[0].mxu0
    %v1875 = vadd.f32 %v1714, %v1874
    %v1876 = vpop.f32.mrb[0].mxu0
    %v1877 = vpop.f32.mrb[0].mxu0
    %v1878 = vadd.f32 %v1717, %v1877
    %v1879 = vpop.f32.mrb[0].mxu0
    %1880 = vmatprep.mubr.bf16.mxu0 0
    %1881 = vmatmul.mubr.bf16.gmra.mrb[0].mxu0 %v1248
    %v1882 = vpop.f32.mrb[0].mxu0
    %v1883 = vadd.f32 %v1722, %v1882
    %v1884 = vpop.f32.mrb[0].mxu0
    %v1885 = vpop.f32.mrb[0].mxu0
    %v1886 = vadd.f32 %v1725, %v1885
    %v1887 = vpop.f32.mrb[0].mxu0
    %1888 = vmatprep.mubr.bf16.mxu0 0
    %1889 = vmatmul.mubr.bf16.gmra.mrb[0].mxu0 %v1251
    %v1890 = vpop.f32.mrb[0].mxu0
    %v1891 = vadd.f32 %v1730, %v1890
    %v1892 = vpop.f32.mrb[0].mxu0
    %v1893 = vpop.f32.mrb[0].mxu0
    %v1894 = vadd.f32 %v1733, %v1893
    %v1895 = vpop.f32.mrb[0].mxu0
    %1896 = vdwg.mxu0
    %v1897 = vmax.f32 %v1771, 0.0
    %v1898 = vmax.f32 %v1774, 0.0
    %v1899 = vmax.f32 %v1779, 0.0
    %v1900 = vmax.f32 %v1782, 0.0
    %v1901 = vmax.f32 %v1787, 0.0
    %v1902 = vmax.f32 %v1790, 0.0
    %v1903 = vmax.f32 %v1795, 0.0
    %v1904 = vmax.f32 %v1798, 0.0
    %v1905 = vmax.f32 %v1803, 0.0
    %v1906 = vmax.f32 %v1806, 0.0
    %v1907 = vmax.f32 %v1811, 0.0
    %v1908 = vmax.f32 %v1814, 0.0
    %v1909 = vmax.f32 %v1819, 0.0
    %v1910 = vmax.f32 %v1822, 0.0
    %v1911 = vmax.f32 %v1827, 0.0
    %v1912 = vmax.f32 %v1830, 0.0
    %v1913 = vmax.f32 %v1835, 0.0
    %v1914 = vmax.f32 %v1838, 0.0
    %v1915 = vmax.f32 %v1843, 0.0
    %v1916 = vmax.f32 %v1846, 0.0
    %v1917 = vmax.f32 %v1851, 0.0
    %v1918 = vmax.f32 %v1854, 0.0
    %v1919 = vmax.f32 %v1859, 0.0
    %v1920 = vmax.f32 %v1862, 0.0
    %v1921 = vmax.f32 %v1867, 0.0
    %v1922 = vmax.f32 %v1870, 0.0
    %v1923 = vmax.f32 %v1875, 0.0
    %v1924 = vmax.f32 %v1878, 0.0
    %v1925 = vmax.f32 %v1883, 0.0
    %v1926 = vmax.f32 %v1886, 0.0
    %v1927 = vmax.f32 %v1891, 0.0
    %v1928 = vmax.f32 %v1894, 0.0
    %v1929 = vpack.c.bf16 %v1898, %v1897
    %v1930 = vpack.c.bf16 %v1900, %v1899
    %v1931 = vpack.c.bf16 %v1902, %v1901
    %v1932 = vpack.c.bf16 %v1904, %v1903
    %v1933 = vpack.c.bf16 %v1906, %v1905
    %v1934 = vpack.c.bf16 %v1908, %v1907
    %v1935 = vpack.c.bf16 %v1910, %v1909
    %v1936 = vpack.c.bf16 %v1912, %v1911
    %v1937 = vpack.c.bf16 %v1914, %v1913
    %v1938 = vpack.c.bf16 %v1916, %v1915
    %v1939 = vpack.c.bf16 %v1918, %v1917
    %v1940 = vpack.c.bf16 %v1920, %v1919
    %v1941 = vpack.c.bf16 %v1922, %v1921
    %v1942 = vpack.c.bf16 %v1924, %v1923
    %v1943 = vpack.c.bf16 %v1926, %v1925
    %v1944 = vpack.c.bf16 %v1928, %v1927
    %v1945 = vld [vmem:[#allocation8] sm:$0xf]
    %v1946 = vld [vmem:[#allocation8 + $0x4] sm:$0xf]
    %v1947 = vld [vmem:[#allocation8 + $0x8] sm:$0xf]
    %v1948 = vld [vmem:[#allocation8 + $0xc] sm:$0xf]
    %v1949 = vld [vmem:[#allocation8 + $0x10] sm:$0xf]
    %v1950 = vld [vmem:[#allocation8 + $0x14] sm:$0xf]
    %v1951 = vld [vmem:[#allocation8 + $0x18] sm:$0xf]
    %v1952 = vld [vmem:[#allocation8 + $0x1c] sm:$0xf]
    %v1953 = vld [vmem:[#allocation8 + $0x20] sm:$0xf]
    %v1954 = vld [vmem:[#allocation8 + $0x24] sm:$0xf]
    %v1955 = vld [vmem:[#allocation8 + $0x28] sm:$0xf]
    %v1956 = vld [vmem:[#allocation8 + $0x2c] sm:$0xf]
    %v1957 = vld [vmem:[#allocation8 + $0x30] sm:$0xf]
    %v1958 = vld [vmem:[#allocation8 + $0x34] sm:$0xf]
    %v1959 = vld [vmem:[#allocation8 + $0x38] sm:$0xf]
    %v1960 = vld [vmem:[#allocation8 + $0x3c] sm:$0xf]
    %v1961 = vld [vmem:[#allocation10] sm:$0x1]
    %v1963 = vlaneseq
    %v1964 = vshrl.u32 %v1963, 7
    %v1965 = vsub.s32 0, %v1964
    %v1966 = vrot.slane %v1961, %v1965
    %v1984 = vunpack.c.l.b16 %v1945
    %v1985 = vunpack.c.l.b16 %v1946
    %v1986 = vunpack.c.l.b16 %v1947
    %v1987 = vunpack.c.l.b16 %v1948
    %v1988 = vunpack.c.l.b16 %v1949
    %v1989 = vunpack.c.l.b16 %v1950
    %v1990 = vunpack.c.l.b16 %v1951
    %v1991 = vunpack.c.l.b16 %v1952
    %v1992 = vunpack.c.l.b16 %v1953
    %v1993 = vunpack.c.l.b16 %v1954
    %v1994 = vunpack.c.l.b16 %v1955
    %v1995 = vunpack.c.l.b16 %v1956
    %v1996 = vunpack.c.l.b16 %v1957
    %v1997 = vunpack.c.l.b16 %v1958
    %v1998 = vunpack.c.l.b16 %v1959
    %v1999 = vunpack.c.l.b16 %v1960
    %v2000 = vpack.c.b16 %v1985, %v1984
    %v2001 = vpack.c.b16 %v1987, %v1986
    %v2002 = vpack.c.b16 %v1989, %v1988
    %v2003 = vpack.c.b16 %v1991, %v1990
    %v2004 = vpack.c.b16 %v1993, %v1992
    %v2005 = vpack.c.b16 %v1995, %v1994
    %v2006 = vpack.c.b16 %v1997, %v1996
    %v2007 = vpack.c.b16 %v1999, %v1998
    %2016 = vmatprep.subr.bf16.mxu0 0
    %2017 = vmatpush1.bf16.msra.mxu0 %v2000
    %2018 = vmatprep.subr.bf16.mxu0 0
    %2019 = vmatpush1.bf16.msra.mxu0 %v2001
    %2020 = vmatprep.subr.bf16.mxu0 0
    %2021 = vmatpush1.bf16.msra.mxu0 %v2002
    %2022 = vmatprep.subr.bf16.mxu0 0
    %2023 = vmatpush1.bf16.msra.mxu0 %v2003
    %2024 = vmatprep.subr.bf16.mxu0 0
    %2025 = vmatpush1.bf16.msra.mxu0 %v2004
    %2026 = vmatprep.subr.bf16.mxu0 0
    %2027 = vmatpush1.bf16.msra.mxu0 %v2005
    %2028 = vmatprep.subr.bf16.mxu0 0
    %2029 = vmatpush1.bf16.msra.mxu0 %v2006
    %2030 = vmatprep.subr.bf16.mxu0 0
    %2031 = vmatpush1.bf16.msra.mxu0 %v2007
    %2032 = vmatprep.subr.bf16.mxu0 0
    %2033 = vmatpush1.bf16.msra.mxu0 0
    %2034 = vmatprep.subr.bf16.mxu0 0
    %2035 = vmatpush1.bf16.msra.mxu0 0
    %2036 = vmatprep.subr.bf16.mxu0 0
    %2037 = vmatpush1.bf16.msra.mxu0 0
    %2038 = vmatprep.subr.bf16.mxu0 0
    %2039 = vmatpush1.bf16.msra.mxu0 0
    %2040 = vmatprep.subr.bf16.mxu0 0
    %2041 = vmatpush1.bf16.msra.mxu0 0
    %2042 = vmatprep.subr.bf16.mxu0 0
    %2043 = vmatpush1.bf16.msra.mxu0 0
    %2044 = vmatprep.subr.bf16.mxu0 0
    %2045 = vmatpush1.bf16.msra.mxu0 0
    %2046 = vmatprep.subr.bf16.mxu0 0
    %2047 = vmatpush1.bf16.msra.mxu0 0
    %2048 = vmatprep.mubr.bf16.mxu0 0
    %2049 = vmatmul.mubr.bf16.gmra.mrb[0].mxu0 %v1929
    %v2050 = vpop.f32.mrb[0].mxu0
    %v2051 = vadd.f32 %v1966, %v2050
    %v2052 = vpop.f32.mrb[0].mxu0
    %v2053 = vpop.f32.mrb[0].mxu0
    %v2054 = vadd.f32 %v1966, %v2053
    %v2055 = vpop.f32.mrb[0].mxu0
    %2056 = vmatprep.mubr.bf16.mxu0 0
    %2057 = vmatmul.mubr.bf16.gmra.mrb[0].mxu0 %v1930
    %v2058 = vpop.f32.mrb[0].mxu0
    %v2059 = vadd.f32 %v1966, %v2058
    %v2060 = vpop.f32.mrb[0].mxu0
    %v2061 = vpop.f32.mrb[0].mxu0
    %v2062 = vadd.f32 %v1966, %v2061
    %v2063 = vpop.f32.mrb[0].mxu0
    %2064 = vmatprep.mubr.bf16.mxu0 0
    %2065 = vmatmul.mubr.bf16.gmra.mrb[0].mxu0 %v1931
    %v2066 = vpop.f32.mrb[0].mxu0
    %v2067 = vadd.f32 %v1966, %v2066
    %v2068 = vpop.f32.mrb[0].mxu0
    %v2069 = vpop.f32.mrb[0].mxu0
    %v2070 = vadd.f32 %v1966, %v2069
    %v2071 = vpop.f32.mrb[0].mxu0
    %2072 = vmatprep.mubr.bf16.mxu0 0
    %2073 = vmatmul.mubr.bf16.gmra.mrb[0].mxu0 %v1932
    %v2074 = vpop.f32.mrb[0].mxu0
    %v2075 = vadd.f32 %v1966, %v2074
    %v2076 = vpop.f32.mrb[0].mxu0
    %v2077 = vpop.f32.mrb[0].mxu0
    %v2078 = vadd.f32 %v1966, %v2077
    %v2079 = vpop.f32.mrb[0].mxu0
    %2080 = vmatprep.mubr.bf16.mxu0 0
    %2081 = vmatmul.mubr.bf16.gmra.mrb[0].mxu0 %v1933
    %v2082 = vpop.f32.mrb[0].mxu0
    %v2083 = vadd.f32 %v1966, %v2082
    %v2084 = vpop.f32.mrb[0].mxu0
    %v2085 = vpop.f32.mrb[0].mxu0
    %v2086 = vadd.f32 %v1966, %v2085
    %v2087 = vpop.f32.mrb[0].mxu0
    %2088 = vmatprep.mubr.bf16.mxu0 0
    %2089 = vmatmul.mubr.bf16.gmra.mrb[0].mxu0 %v1934
    %v2090 = vpop.f32.mrb[0].mxu0
    %v2091 = vadd.f32 %v1966, %v2090
    %v2092 = vpop.f32.mrb[0].mxu0
    %v2093 = vpop.f32.mrb[0].mxu0
    %v2094 = vadd.f32 %v1966, %v2093
    %v2095 = vpop.f32.mrb[0].mxu0
    %2096 = vmatprep.mubr.bf16.mxu0 0
    %2097 = vmatmul.mubr.bf16.gmra.mrb[0].mxu0 %v1935
    %v2098 = vpop.f32.mrb[0].mxu0
    %v2099 = vadd.f32 %v1966, %v2098
    %v2100 = vpop.f32.mrb[0].mxu0
    %v2101 = vpop.f32.mrb[0].mxu0
    %v2102 = vadd.f32 %v1966, %v2101
    %v2103 = vpop.f32.mrb[0].mxu0
    %2104 = vmatprep.mubr.bf16.mxu0 0
    %2105 = vmatmul.mubr.bf16.gmra.mrb[0].mxu0 %v1936
    %v2106 = vpop.f32.mrb[0].mxu0
    %v2107 = vadd.f32 %v1966, %v2106
    %v2108 = vpop.f32.mrb[0].mxu0
    %v2109 = vpop.f32.mrb[0].mxu0
    %v2110 = vadd.f32 %v1966, %v2109
    %v2111 = vpop.f32.mrb[0].mxu0
    %2112 = vmatprep.mubr.bf16.mxu0 0
    %2113 = vmatmul.mubr.bf16.gmra.mrb[0].mxu0 %v1937
    %v2114 = vpop.f32.mrb[0].mxu0
    %v2115 = vadd.f32 %v1966, %v2114
    %v2116 = vpop.f32.mrb[0].mxu0
    %v2117 = vpop.f32.mrb[0].mxu0
    %v2118 = vadd.f32 %v1966, %v2117
    %v2119 = vpop.f32.mrb[0].mxu0
    %2120 = vmatprep.mubr.bf16.mxu0 0
    %2121 = vmatmul.mubr.bf16.gmra.mrb[0].mxu0 %v1938
    %v2122 = vpop.f32.mrb[0].mxu0
    %v2123 = vadd.f32 %v1966, %v2122
    %v2124 = vpop.f32.mrb[0].mxu0
    %v2125 = vpop.f32.mrb[0].mxu0
    %v2126 = vadd.f32 %v1966, %v2125
    %v2127 = vpop.f32.mrb[0].mxu0
    %2128 = vmatprep.mubr.bf16.mxu0 0
    %2129 = vmatmul.mubr.bf16.gmra.mrb[0].mxu0 %v1939
    %v2130 = vpop.f32.mrb[0].mxu0
    %v2131 = vadd.f32 %v1966, %v2130
    %v2132 = vpop.f32.mrb[0].mxu0
    %v2133 = vpop.f32.mrb[0].mxu0
    %v2134 = vadd.f32 %v1966, %v2133
    %v2135 = vpop.f32.mrb[0].mxu0
    %2136 = vmatprep.mubr.bf16.mxu0 0
    %2137 = vmatmul.mubr.bf16.gmra.mrb[0].mxu0 %v1940
    %v2138 = vpop.f32.mrb[0].mxu0
    %v2139 = vadd.f32 %v1966, %v2138
    %v2140 = vpop.f32.mrb[0].mxu0
    %v2141 = vpop.f32.mrb[0].mxu0
    %v2142 = vadd.f32 %v1966, %v2141
    %v2143 = vpop.f32.mrb[0].mxu0
    %2144 = vmatprep.mubr.bf16.mxu0 0
    %2145 = vmatmul.mubr.bf16.gmra.mrb[0].mxu0 %v1941
    %v2146 = vpop.f32.mrb[0].mxu0
    %v2147 = vadd.f32 %v1966, %v2146
    %v2148 = vpop.f32.mrb[0].mxu0
    %v2149 = vpop.f32.mrb[0].mxu0
    %v2150 = vadd.f32 %v1966, %v2149
    %v2151 = vpop.f32.mrb[0].mxu0
    %2152 = vmatprep.mubr.bf16.mxu0 0
    %2153 = vmatmul.mubr.bf16.gmra.mrb[0].mxu0 %v1942
    %v2154 = vpop.f32.mrb[0].mxu0
    %v2155 = vadd.f32 %v1966, %v2154
    %v2156 = vpop.f32.mrb[0].mxu0
    %v2157 = vpop.f32.mrb[0].mxu0
    %v2158 = vadd.f32 %v1966, %v2157
    %v2159 = vpop.f32.mrb[0].mxu0
    %2160 = vmatprep.mubr.bf16.mxu0 0
    %2161 = vmatmul.mubr.bf16.gmra.mrb[0].mxu0 %v1943
    %v2162 = vpop.f32.mrb[0].mxu0
    %v2163 = vadd.f32 %v1966, %v2162
    %v2164 = vpop.f32.mrb[0].mxu0
    %v2165 = vpop.f32.mrb[0].mxu0
    %v2166 = vadd.f32 %v1966, %v2165
    %v2167 = vpop.f32.mrb[0].mxu0
    %2168 = vmatprep.mubr.bf16.mxu0 0
    %2169 = vmatmul.mubr.bf16.gmra.mrb[0].mxu0 %v1944
    %v2170 = vpop.f32.mrb[0].mxu0
    %v2171 = vadd.f32 %v1966, %v2170
    %v2172 = vpop.f32.mrb[0].mxu0
    %v2173 = vpop.f32.mrb[0].mxu0
    %v2174 = vadd.f32 %v1966, %v2173
    %v2175 = vpop.f32.mrb[0].mxu0
    %2176 = vdwg.mxu0
    %v2177 = vmax.f32 %v2051, 0.0
    %v2178 = vmax.f32 %v2054, 0.0
    %v2179 = vmax.f32 %v2059, 0.0
    %v2180 = vmax.f32 %v2062, 0.0
    %v2181 = vmax.f32 %v2067, 0.0
    %v2182 = vmax.f32 %v2070, 0.0
    %v2183 = vmax.f32 %v2075, 0.0
    %v2184 = vmax.f32 %v2078, 0.0
    %v2185 = vmax.f32 %v2083, 0.0
    %v2186 = vmax.f32 %v2086, 0.0
    %v2187 = vmax.f32 %v2091, 0.0
    %v2188 = vmax.f32 %v2094, 0.0
    %v2189 = vmax.f32 %v2099, 0.0
    %v2190 = vmax.f32 %v2102, 0.0
    %v2191 = vmax.f32 %v2107, 0.0
    %v2192 = vmax.f32 %v2110, 0.0
    %v2193 = vmax.f32 %v2115, 0.0
    %v2194 = vmax.f32 %v2118, 0.0
    %v2195 = vmax.f32 %v2123, 0.0
    %v2196 = vmax.f32 %v2126, 0.0
    %v2197 = vmax.f32 %v2131, 0.0
    %v2198 = vmax.f32 %v2134, 0.0
    %v2199 = vmax.f32 %v2139, 0.0
    %v2200 = vmax.f32 %v2142, 0.0
    %v2201 = vmax.f32 %v2147, 0.0
    %v2202 = vmax.f32 %v2150, 0.0
    %v2203 = vmax.f32 %v2155, 0.0
    %v2204 = vmax.f32 %v2158, 0.0
    %v2205 = vmax.f32 %v2163, 0.0
    %v2206 = vmax.f32 %v2166, 0.0
    %v2207 = vmax.f32 %v2171, 0.0
    %v2208 = vmax.f32 %v2174, 0.0
    %v2209 = vpack.c.bf16 %v2178, %v2177
    %v2210 = vpack.c.bf16 %v2180, %v2179
    %v2211 = vpack.c.bf16 %v2182, %v2181
    %v2212 = vpack.c.bf16 %v2184, %v2183
    %v2213 = vpack.c.bf16 %v2186, %v2185
    %v2214 = vpack.c.bf16 %v2188, %v2187
    %v2215 = vpack.c.bf16 %v2190, %v2189
    %v2216 = vpack.c.bf16 %v2192, %v2191
    %v2217 = vpack.c.bf16 %v2194, %v2193
    %v2218 = vpack.c.bf16 %v2196, %v2195
    %v2219 = vpack.c.bf16 %v2198, %v2197
    %v2220 = vpack.c.bf16 %v2200, %v2199
    %v2221 = vpack.c.bf16 %v2202, %v2201
    %v2222 = vpack.c.bf16 %v2204, %v2203
    %v2223 = vpack.c.bf16 %v2206, %v2205
    %v2224 = vpack.c.bf16 %v2208, %v2207
    %v2225 = vld [vmem:[#allocation11] sm:$0xf]
    %v2226 = vld [vmem:[#allocation11 + $0x4] sm:$0xf]
    %v2227 = vld [vmem:[#allocation11 + $0x8] sm:$0xf]
    %v2228 = vld [vmem:[#allocation11 + $0xc] sm:$0xf]
    %v2229 = vld [vmem:[#allocation11 + $0x10] sm:$0xf]
    %v2230 = vld [vmem:[#allocation11 + $0x14] sm:$0xf]
    %v2231 = vld [vmem:[#allocation11 + $0x18] sm:$0xf]
    %v2232 = vld [vmem:[#allocation11 + $0x1c] sm:$0xf]
    %v2233 = vld [vmem:[#allocation11 + $0x20] sm:$0xf]
    %v2234 = vld [vmem:[#allocation11 + $0x24] sm:$0xf]
    %v2235 = vld [vmem:[#allocation11 + $0x28] sm:$0xf]
    %v2236 = vld [vmem:[#allocation11 + $0x2c] sm:$0xf]
    %v2237 = vld [vmem:[#allocation11 + $0x30] sm:$0xf]
    %v2238 = vld [vmem:[#allocation11 + $0x34] sm:$0xf]
    %v2239 = vld [vmem:[#allocation11 + $0x38] sm:$0xf]
    %v2240 = vld [vmem:[#allocation11 + $0x3c] sm:$0xf]
    %v2241 = vld [vmem:[#allocation13] sm:$0x1]
    %v2243 = vlaneseq
    %v2244 = vshrl.u32 %v2243, 7
    %v2245 = vsub.s32 0, %v2244
    %v2246 = vrot.slane %v2241, %v2245
    %v2264 = vunpack.c.l.b16 %v2225
    %v2265 = vunpack.c.l.b16 %v2226
    %v2266 = vunpack.c.l.b16 %v2227
    %v2267 = vunpack.c.l.b16 %v2228
    %v2268 = vunpack.c.l.b16 %v2229
    %v2269 = vunpack.c.l.b16 %v2230
    %v2270 = vunpack.c.l.b16 %v2231
    %v2271 = vunpack.c.l.b16 %v2232
    %v2272 = vunpack.c.l.b16 %v2233
    %v2273 = vunpack.c.l.b16 %v2234
    %v2274 = vunpack.c.l.b16 %v2235
    %v2275 = vunpack.c.l.b16 %v2236
    %v2276 = vunpack.c.l.b16 %v2237
    %v2277 = vunpack.c.l.b16 %v2238
    %v2278 = vunpack.c.l.b16 %v2239
    %v2279 = vunpack.c.l.b16 %v2240
    %v2280 = vpack.c.b16 %v2265, %v2264
    %v2281 = vpack.c.b16 %v2267, %v2266
    %v2282 = vpack.c.b16 %v2269, %v2268
    %v2283 = vpack.c.b16 %v2271, %v2270
    %v2284 = vpack.c.b16 %v2273, %v2272
    %v2285 = vpack.c.b16 %v2275, %v2274
    %v2286 = vpack.c.b16 %v2277, %v2276
    %v2287 = vpack.c.b16 %v2279, %v2278
    %2296 = vmatprep.subr.bf16.mxu0 0
    %2297 = vmatpush1.bf16.msra.mxu0 %v2280
    %2298 = vmatprep.subr.bf16.mxu0 0
    %2299 = vmatpush1.bf16.msra.mxu0 %v2281
    %2300 = vmatprep.subr.bf16.mxu0 0
    %2301 = vmatpush1.bf16.msra.mxu0 %v2282
    %2302 = vmatprep.subr.bf16.mxu0 0
    %2303 = vmatpush1.bf16.msra.mxu0 %v2283
    %2304 = vmatprep.subr.bf16.mxu0 0
    %2305 = vmatpush1.bf16.msra.mxu0 %v2284
    %2306 = vmatprep.subr.bf16.mxu0 0
    %2307 = vmatpush1.bf16.msra.mxu0 %v2285
    %2308 = vmatprep.subr.bf16.mxu0 0
    %2309 = vmatpush1.bf16.msra.mxu0 %v2286
    %2310 = vmatprep.subr.bf16.mxu0 0
    %2311 = vmatpush1.bf16.msra.mxu0 %v2287
    %2312 = vmatprep.subr.bf16.mxu0 0
    %2313 = vmatpush1.bf16.msra.mxu0 0
    %2314 = vmatprep.subr.bf16.mxu0 0
    %2315 = vmatpush1.bf16.msra.mxu0 0
    %2316 = vmatprep.subr.bf16.mxu0 0
    %2317 = vmatpush1.bf16.msra.mxu0 0
    %2318 = vmatprep.subr.bf16.mxu0 0
    %2319 = vmatpush1.bf16.msra.mxu0 0
    %2320 = vmatprep.subr.bf16.mxu0 0
    %2321 = vmatpush1.bf16.msra.mxu0 0
    %2322 = vmatprep.subr.bf16.mxu0 0
    %2323 = vmatpush1.bf16.msra.mxu0 0
    %2324 = vmatprep.subr.bf16.mxu0 0
    %2325 = vmatpush1.bf16.msra.mxu0 0
    %2326 = vmatprep.subr.bf16.mxu0 0
    %2327 = vmatpush1.bf16.msra.mxu0 0
    %2328 = vmatprep.mubr.bf16.mxu0 0
    %2329 = vmatmul.mubr.bf16.gmra.mrb[0].mxu0 %v2209
    %v2330 = vpop.f32.mrb[0].mxu0
    %v2331 = vadd.f32 %v2246, %v2330
    %v2332 = vpop.f32.mrb[0].mxu0
    %v2333 = vpop.f32.mrb[0].mxu0
    %v2334 = vadd.f32 %v2246, %v2333
    %v2335 = vpop.f32.mrb[0].mxu0
    %2336 = vmatprep.mubr.bf16.mxu0 0
    %2337 = vmatmul.mubr.bf16.gmra.mrb[0].mxu0 %v2210
    %v2338 = vpop.f32.mrb[0].mxu0
    %v2339 = vadd.f32 %v2246, %v2338
    %v2340 = vpop.f32.mrb[0].mxu0
    %v2341 = vpop.f32.mrb[0].mxu0
    %v2342 = vadd.f32 %v2246, %v2341
    %v2343 = vpop.f32.mrb[0].mxu0
    %2344 = vmatprep.mubr.bf16.mxu0 0
    %2345 = vmatmul.mubr.bf16.gmra.mrb[0].mxu0 %v2211
    %v2346 = vpop.f32.mrb[0].mxu0
    %v2347 = vadd.f32 %v2246, %v2346
    %v2348 = vpop.f32.mrb[0].mxu0
    %v2349 = vpop.f32.mrb[0].mxu0
    %v2350 = vadd.f32 %v2246, %v2349
    %v2351 = vpop.f32.mrb[0].mxu0
    %2352 = vmatprep.mubr.bf16.mxu0 0
    %2353 = vmatmul.mubr.bf16.gmra.mrb[0].mxu0 %v2212
    %v2354 = vpop.f32.mrb[0].mxu0
    %v2355 = vadd.f32 %v2246, %v2354
    %v2356 = vpop.f32.mrb[0].mxu0
    %v2357 = vpop.f32.mrb[0].mxu0
    %v2358 = vadd.f32 %v2246, %v2357
    %v2359 = vpop.f32.mrb[0].mxu0
    %2360 = vmatprep.mubr.bf16.mxu0 0
    %2361 = vmatmul.mubr.bf16.gmra.mrb[0].mxu0 %v2213
    %v2362 = vpop.f32.mrb[0].mxu0
    %v2363 = vadd.f32 %v2246, %v2362
    %v2364 = vpop.f32.mrb[0].mxu0
    %v2365 = vpop.f32.mrb[0].mxu0
    %v2366 = vadd.f32 %v2246, %v2365
    %v2367 = vpop.f32.mrb[0].mxu0
    %2368 = vmatprep.mubr.bf16.mxu0 0
    %2369 = vmatmul.mubr.bf16.gmra.mrb[0].mxu0 %v2214
    %v2370 = vpop.f32.mrb[0].mxu0
    %v2371 = vadd.f32 %v2246, %v2370
    %v2372 = vpop.f32.mrb[0].mxu0
    %v2373 = vpop.f32.mrb[0].mxu0
    %v2374 = vadd.f32 %v2246, %v2373
    %v2375 = vpop.f32.mrb[0].mxu0
    %2376 = vmatprep.mubr.bf16.mxu0 0
    %2377 = vmatmul.mubr.bf16.gmra.mrb[0].mxu0 %v2215
    %v2378 = vpop.f32.mrb[0].mxu0
    %v2379 = vadd.f32 %v2246, %v2378
    %v2380 = vpop.f32.mrb[0].mxu0
    %v2381 = vpop.f32.mrb[0].mxu0
    %v2382 = vadd.f32 %v2246, %v2381
    %v2383 = vpop.f32.mrb[0].mxu0
    %2384 = vmatprep.mubr.bf16.mxu0 0
    %2385 = vmatmul.mubr.bf16.gmra.mrb[0].mxu0 %v2216
    %v2386 = vpop.f32.mrb[0].mxu0
    %v2387 = vadd.f32 %v2246, %v2386
    %v2388 = vpop.f32.mrb[0].mxu0
    %v2389 = vpop.f32.mrb[0].mxu0
    %v2390 = vadd.f32 %v2246, %v2389
    %v2391 = vpop.f32.mrb[0].mxu0
    %2392 = vmatprep.mubr.bf16.mxu0 0
    %2393 = vmatmul.mubr.bf16.gmra.mrb[0].mxu0 %v2217
    %v2394 = vpop.f32.mrb[0].mxu0
    %v2395 = vadd.f32 %v2246, %v2394
    %v2396 = vpop.f32.mrb[0].mxu0
    %v2397 = vpop.f32.mrb[0].mxu0
    %v2398 = vadd.f32 %v2246, %v2397
    %v2399 = vpop.f32.mrb[0].mxu0
    %2400 = vmatprep.mubr.bf16.mxu0 0
    %2401 = vmatmul.mubr.bf16.gmra.mrb[0].mxu0 %v2218
    %v2402 = vpop.f32.mrb[0].mxu0
    %v2403 = vadd.f32 %v2246, %v2402
    %v2404 = vpop.f32.mrb[0].mxu0
    %v2405 = vpop.f32.mrb[0].mxu0
    %v2406 = vadd.f32 %v2246, %v2405
    %v2407 = vpop.f32.mrb[0].mxu0
    %2408 = vmatprep.mubr.bf16.mxu0 0
    %2409 = vmatmul.mubr.bf16.gmra.mrb[0].mxu0 %v2219
    %v2410 = vpop.f32.mrb[0].mxu0
    %v2411 = vadd.f32 %v2246, %v2410
    %v2412 = vpop.f32.mrb[0].mxu0
    %v2413 = vpop.f32.mrb[0].mxu0
    %v2414 = vadd.f32 %v2246, %v2413
    %v2415 = vpop.f32.mrb[0].mxu0
    %2416 = vmatprep.mubr.bf16.mxu0 0
    %2417 = vmatmul.mubr.bf16.gmra.mrb[0].mxu0 %v2220
    %v2418 = vpop.f32.mrb[0].mxu0
    %v2419 = vadd.f32 %v2246, %v2418
    %v2420 = vpop.f32.mrb[0].mxu0
    %v2421 = vpop.f32.mrb[0].mxu0
    %v2422 = vadd.f32 %v2246, %v2421
    %v2423 = vpop.f32.mrb[0].mxu0
    %2424 = vmatprep.mubr.bf16.mxu0 0
    %2425 = vmatmul.mubr.bf16.gmra.mrb[0].mxu0 %v2221
    %v2426 = vpop.f32.mrb[0].mxu0
    %v2427 = vadd.f32 %v2246, %v2426
    %v2428 = vpop.f32.mrb[0].mxu0
    %v2429 = vpop.f32.mrb[0].mxu0
    %v2430 = vadd.f32 %v2246, %v2429
    %v2431 = vpop.f32.mrb[0].mxu0
    %2432 = vmatprep.mubr.bf16.mxu0 0
    %2433 = vmatmul.mubr.bf16.gmra.mrb[0].mxu0 %v2222
    %v2434 = vpop.f32.mrb[0].mxu0
    %v2435 = vadd.f32 %v2246, %v2434
    %v2436 = vpop.f32.mrb[0].mxu0
    %v2437 = vpop.f32.mrb[0].mxu0
    %v2438 = vadd.f32 %v2246, %v2437
    %v2439 = vpop.f32.mrb[0].mxu0
    %2440 = vmatprep.mubr.bf16.mxu0 0
    %2441 = vmatmul.mubr.bf16.gmra.mrb[0].mxu0 %v2223
    %v2442 = vpop.f32.mrb[0].mxu0
    %v2443 = vadd.f32 %v2246, %v2442
    %v2444 = vpop.f32.mrb[0].mxu0
    %v2445 = vpop.f32.mrb[0].mxu0
    %v2446 = vadd.f32 %v2246, %v2445
    %v2447 = vpop.f32.mrb[0].mxu0
    %2448 = vmatprep.mubr.bf16.mxu0 0
    %2449 = vmatmul.mubr.bf16.gmra.mrb[0].mxu0 %v2224
    %v2450 = vpop.f32.mrb[0].mxu0
    %v2451 = vadd.f32 %v2246, %v2450
    %v2452 = vpop.f32.mrb[0].mxu0
    %v2453 = vpop.f32.mrb[0].mxu0
    %v2454 = vadd.f32 %v2246, %v2453
    %v2455 = vpop.f32.mrb[0].mxu0
    %2456 = vdwg.mxu0
    %2457 = vst [vmem:[#allocation14] sm:$0xff] %v2331
    %2458 = vst [vmem:[#allocation14 + $0x8] sm:$0xff] %v2334
    %2459 = vst [vmem:[#allocation14 + $0x10] sm:$0xff] %v2339
    %2460 = vst [vmem:[#allocation14 + $0x18] sm:$0xff] %v2342
    %2461 = vst [vmem:[#allocation14 + $0x20] sm:$0xff] %v2347
    %2462 = vst [vmem:[#allocation14 + $0x28] sm:$0xff] %v2350
    %2463 = vst [vmem:[#allocation14 + $0x30] sm:$0xff] %v2355
    %2464 = vst [vmem:[#allocation14 + $0x38] sm:$0xff] %v2358
    %2465 = vst [vmem:[#allocation14 + $0x40] sm:$0xff] %v2363
    %2466 = vst [vmem:[#allocation14 + $0x48] sm:$0xff] %v2366
    %2467 = vst [vmem:[#allocation14 + $0x50] sm:$0xff] %v2371
    %2468 = vst [vmem:[#allocation14 + $0x58] sm:$0xff] %v2374
    %2469 = vst [vmem:[#allocation14 + $0x60] sm:$0xff] %v2379
    %2470 = vst [vmem:[#allocation14 + $0x68] sm:$0xff] %v2382
    %2471 = vst [vmem:[#allocation14 + $0x70] sm:$0xff] %v2387
    %2472 = vst [vmem:[#allocation14 + $0x78] sm:$0xff] %v2390
    %2473 = vst [vmem:[#allocation14 + $0x80] sm:$0xff] %v2395
    %2474 = vst [vmem:[#allocation14 + $0x88] sm:$0xff] %v2398
    %2475 = vst [vmem:[#allocation14 + $0x90] sm:$0xff] %v2403
    %2476 = vst [vmem:[#allocation14 + $0x98] sm:$0xff] %v2406
    %2477 = vst [vmem:[#allocation14 + $0xa0] sm:$0xff] %v2411
    %2478 = vst [vmem:[#allocation14 + $0xa8] sm:$0xff] %v2414
    %2479 = vst [vmem:[#allocation14 + $0xb0] sm:$0xff] %v2419
    %2480 = vst [vmem:[#allocation14 + $0xb8] sm:$0xff] %v2422
    %2481 = vst [vmem:[#allocation14 + $0xc0] sm:$0xff] %v2427
    %2482 = vst [vmem:[#allocation14 + $0xc8] sm:$0xff] %v2430
    %2483 = vst [vmem:[#allocation14 + $0xd0] sm:$0xff] %v2435
    %2484 = vst [vmem:[#allocation14 + $0xd8] sm:$0xff] %v2438
    %2485 = vst [vmem:[#allocation14 + $0xe0] sm:$0xff] %v2443
    %2486 = vst [vmem:[#allocation14 + $0xe8] sm:$0xff] %v2446
    %2487 = vst [vmem:[#allocation14 + $0xf0] sm:$0xff] %v2451
    %2488 = vst [vmem:[#allocation14 + $0xf8] sm:$0xff] %v2454
    // Predicated region
    $region58: #{tpu_custom_call.1} parent=1 // pred_check
      _
    $region59: #{tpu_custom_call.1} parent=1 // pred_check_branch
      %2490 = sbr.rel (0) target = $region61
    $region60: #{tpu_custom_call.1} parent=1 // pred_region
      %s2492 = ssub.s32 4096, 4096
      %2493 = vsyncadd [#allocation4], %s2492
      %s2494 = sshll.u32 [#allocation14], 4
      %s2495 = int_to_ptr.vmem [resolvable:$true] %s2494
      %2500 = dma.vmem_to_hbm [thread:$0]  %s2495, 4096, %s7, [#allocation4], 128, 128, 8
    $region61: #{tpu_custom_call.1} parent=1 // pred_fallthru
      _
    // Predicated region
    $region62: #{tpu_custom_call.1} parent=1 // pred_check
      _
    $region63: #{tpu_custom_call.1} parent=1 // pred_check_branch
      %2502 = sbr.rel (0) target = $region65
    $region64: #{tpu_custom_call.1} parent=1 // pred_region
      %2503 = dma.done [#allocation4], 4096
    $region65: #{tpu_custom_call.1} parent=1 // pred_fallthru
      _
    %2504 = vsyncpa [#allocation3], 1
    %2505 = vsyncpa [#allocation6], 1
    %2506 = vsyncpa [#allocation9], 1
    %2507 = vsyncpa [#allocation12], 1
    %2508 = vsyncpa [#allocation4], 1

</llo_original>
